<compile_context>
chip_gen: v7x
topology: tpu7x:2x2x1
jax: 0.10.0
libtpu: 0.0.40
codegen_flags: <defaults>
</compile_context>

<pallas_src>
import functools
import math

import jax
import jax.numpy as jnp
from jax.experimental import pallas as pl
from jax.experimental.pallas import tpu as pltpu


# -----------------------------------------------------------------------------
# Tiling helpers
# -----------------------------------------------------------------------------
def _choose_tt(T, N, D, H, out_bytes, budget_bytes=16 * 2**20, cap=16):
    """Time-block length for the recurrence, budgeted against VMEM.

    Accounts for: double-buffered x block, double-buffered out block, the live
    (tt*N, 4H) f32 gate slab inside the kernel, plus fixed weight blocks and
    h/c scratch.  Rounded so tt*N is a multiple of 8 (sublane rule for the
    flat (tt*N, D) input block when it is not the full array).
    """
    per_tt = 2 * N * D * 4 + 2 * N * H * out_bytes + N * 4 * H * 4
    fixed = 2 * (D * 4 * H + H * 4 * H + 4 * H) * 4 + 2 * N * H * 4
    tt = max(1, min(cap, T, (budget_bytes - fixed) // max(per_tt, 1)))
    g = 8 // math.gcd(N, 8)            # smallest granularity with tt*N % 8 == 0
    tt = max(g, (tt // g) * g)
    return int(tt)


def _choose_tc(tt, B, H, P, budget_bytes=8 * 2**20):
    """Time-block for the combine/projection stage (must divide T_pad)."""
    per_t = (4 * B * H + 2 * B * P) * 4 * 2
    best = 1
    for c in range(1, tt + 1):
        if tt % c == 0 and c * per_t <= budget_bytes:
            best = c
    return best


# -----------------------------------------------------------------------------
# Kernel 1: fused LSTM recurrence. grid = (2 weight sets [parallel], T//tt).
#   x     : (T_pad*N, D)   stacked [real; imag] inputs, time-major rows
#   w_ih  : (2, D, 4H)     input weights (gates i|f|g|o), sigmoid-scale folded
#   w_hh  : (2, H, 4H)     hidden weights (fused gates), sigmoid-scale folded
#   b     : (2, 1, 4H)     combined bias (b_ih + b_hh), sigmoid-scale folded
#   out   : (2, T_pad, N, H)
# h/c state lives in VMEM scratch and persists across time blocks; inside a
# block it is carried in registers.
# -----------------------------------------------------------------------------
def _lstm_kernel(x_ref, wih_ref, whh_ref, b_ref, out_ref, h_scr, c_scr,
                 *, hidden, tt, n_rows, mm_dtype):
    H = hidden
    N = n_rows
    tb = pl.program_id(1)

    @pl.when(tb == 0)
    def _init():
        h_scr[...] = jnp.zeros_like(h_scr)
        c_scr[...] = jnp.zeros_like(c_scr)

    # Hoisted input projection for the whole time block: one (tt*N, D)@(D, 4H)
    # MXU matmul, result kept on-chip (never materialized in HBM).
    xb = x_ref[...].astype(mm_dtype)                       # (tt*N, D)
    wih = wih_ref[...].astype(mm_dtype)                    # (D, 4H)
    gxb = jnp.dot(xb, wih, preferred_element_type=jnp.float32) + b_ref[...]

    whh = whh_ref[...].astype(mm_dtype)                    # (H, 4H), cast hoisted

    # Register-carried state; scratch touched only at block entry/exit.
    h = h_scr[...]
    c = c_scr[...]
    # Full static unroll (tt is small & VMEM-budgeted); all indices static.
    for s in range(tt):
        gx = gxb[s * N:(s + 1) * N, :]                     # (N, 4H) static slice
        gates = gx + jnp.dot(h.astype(mm_dtype), whh,
                             preferred_element_type=jnp.float32)
        # sigmoid(z) = 0.5*tanh(0.5*z)+0.5; the 0.5 pre-scale of i|f|o columns
        # is folded into the weights, so one tanh covers all four gates.
        t = jnp.tanh(gates)
        i_g = 0.5 * t[:, 0:H] + 0.5
        f_g = 0.5 * t[:, H:2 * H] + 0.5
        g_g = t[:, 2 * H:3 * H]
        o_g = 0.5 * t[:, 3 * H:4 * H] + 0.5
        c = f_g * c + i_g * g_g
        h = o_g * jnp.tanh(c)
        out_ref[s] = h.astype(out_ref.dtype)
    h_scr[...] = h
    c_scr[...] = c


# -----------------------------------------------------------------------------
# Kernel 2: complex combine (+ optional projection Linear).
# Inputs are four (tc, B, H) views of the LSTM output selected purely through
# BlockSpec index_maps (no XLA strided slices between kernels).
# -----------------------------------------------------------------------------
def _combine_kernel(r2r, i2r, r2i, i2i, ro, io):
    ro[...] = (r2r[...] - i2i[...]).astype(ro.dtype)
    io[...] = (i2r[...] + r2i[...]).astype(io.dtype)


def _combine_proj_kernel(r2r, i2r, r2i, i2i, wr, br, wi, bi, ro, io,
                         *, tc, mm_dtype):
    real = (r2r[...] - i2i[...]).astype(mm_dtype)          # (tc, B, H)
    imag = (i2r[...] + r2i[...]).astype(mm_dtype)
    wr_ = wr[...].astype(mm_dtype)
    wi_ = wi[...].astype(mm_dtype)
    br_ = br[...]
    bi_ = bi[...]
    for t in range(tc):                                    # static, tc is small
        ro[t] = (jnp.dot(real[t], wr_, preferred_element_type=jnp.float32)
                 + br_).astype(ro.dtype)
        io[t] = (jnp.dot(imag[t], wi_, preferred_element_type=jnp.float32)
                 + bi_).astype(io.dtype)


# -----------------------------------------------------------------------------
# Module-level wrapper (mirrors NavieComplexLSTM.forward, list-input,
# unidirectional case).
# -----------------------------------------------------------------------------
def navie_complex_lstm_forward(params, real, imag, *, compute_dtype=jnp.float32):
    T, B, D = real.shape
    H = params["w_hh"].shape[1]
    N = 2 * B
    out_dtype = real.dtype

    # ---- one-time parameter prep (outside kernels) --------------------------
    # Fold sigmoid's 0.5 pre-scale into the i|f|o gate columns.
    gate_scale = jnp.concatenate(
        [jnp.full((H,), 0.5), jnp.full((H,), 0.5),
         jnp.ones((H,)), jnp.full((H,), 0.5)]).astype(jnp.float32)
    w_ih = params["w_ih"] * gate_scale                     # (2, D, 4H)
    w_hh = params["w_hh"] * gate_scale                     # (2, H, 4H)
    b = params["b"] * gate_scale                           # (2, 1, 4H)

    # Stack real/imag along batch so each LSTM weight set runs only once.
    x = jnp.concatenate([real, imag], axis=1)              # (T, N, D)

    # VMEM-budgeted time block; pad T (causal recurrence -> pad is harmless,
    # padded steps are sliced off at the end).
    tt = _choose_tt(T, N, D, H, out_bytes=jnp.dtype(out_dtype).itemsize)
    T_pad = -(-T // tt) * tt
    if T_pad != T:
        x = jnp.pad(x, ((0, T_pad - T), (0, 0), (0, 0)))
    x_flat = x.reshape(T_pad * N, D)                       # free reshape

    # ---- Stage 1: fused input-projection + recurrence -----------------------
    out = pl.pallas_call(
        functools.partial(_lstm_kernel, hidden=H, tt=tt, n_rows=N,
                          mm_dtype=compute_dtype),
        out_shape=jax.ShapeDtypeStruct((2, T_pad, N, H), out_dtype),
        grid=(2, T_pad // tt),
        in_specs=[
            pl.BlockSpec((tt * N, D), lambda l, tb: (tb, 0)),
            pl.BlockSpec((None, D, 4 * H), lambda l, tb: (l, 0, 0)),
            pl.BlockSpec((None, H, 4 * H), lambda l, tb: (l, 0, 0)),
            pl.BlockSpec((None, 1, 4 * H), lambda l, tb: (l, 0, 0)),
        ],
        out_specs=pl.BlockSpec((None, tt, N, H), lambda l, tb: (l, tb, 0, 0)),
        scratch_shapes=[
            pltpu.VMEM((N, H), jnp.float32),   # h state
            pltpu.VMEM((N, H), jnp.float32),   # c state
        ],
        compiler_params=pltpu.CompilerParams(
            # Layer axis is independent (megacore: one TC per weight set);
            # time axis is the recurrence -> sequential.
            dimension_semantics=("parallel", "arbitrary"),
            vmem_limit_bytes=32 * 2**20),
    )(x_flat, w_ih, w_hh, b)

    # Free reshape: split the stacked batch back into (input-half, B); the
    # combine kernel selects halves/layers via leading squeezed block dims.
    out5 = out.reshape(2, T_pad, 2, B, H)

    P = H if params.get("proj_wr") is None else params["proj_wr"].shape[-1]
    tc = _choose_tc(tt, B, H, P)
    grid_c = (T_pad // tc,)

    def half_spec(layer, half):
        return pl.BlockSpec(
            (None, tc, None, B, H),
            lambda t, layer=layer, half=half: (layer, t, half, 0, 0))

    in_specs_halves = [half_spec(0, 0),   # r2r = real_lstm(real)
                       half_spec(0, 1),   # i2r = real_lstm(imag)
                       half_spec(1, 0),   # r2i = imag_lstm(real)
                       half_spec(1, 1)]   # i2i = imag_lstm(imag)

    if params.get("proj_wr") is None:
        ro, io = pl.pallas_call(
            _combine_kernel,
            out_shape=(jax.ShapeDtypeStruct((T_pad, B, H), out_dtype),
                       jax.ShapeDtypeStruct((T_pad, B, H), out_dtype)),
            grid=grid_c,
            in_specs=in_specs_halves,
            out_specs=(pl.BlockSpec((tc, B, H), lambda t: (t, 0, 0)),
                       pl.BlockSpec((tc, B, H), lambda t: (t, 0, 0))),
            compiler_params=pltpu.CompilerParams(
                dimension_semantics=("parallel",),
                vmem_limit_bytes=32 * 2**20),
        )(out5, out5, out5, out5)
    else:
        ro, io = pl.pallas_call(
            functools.partial(_combine_proj_kernel, tc=tc,
                              mm_dtype=compute_dtype),
            out_shape=(jax.ShapeDtypeStruct((T_pad, B, P), out_dtype),
                       jax.ShapeDtypeStruct((T_pad, B, P), out_dtype)),
            grid=grid_c,
            in_specs=in_specs_halves + [
                pl.BlockSpec((H, P), lambda t: (0, 0)),
                pl.BlockSpec((1, P), lambda t: (0, 0)),
                pl.BlockSpec((H, P), lambda t: (0, 0)),
                pl.BlockSpec((1, P), lambda t: (0, 0)),
            ],
            out_specs=(pl.BlockSpec((tc, B, P), lambda t: (t, 0, 0)),
                       pl.BlockSpec((tc, B, P), lambda t: (t, 0, 0))),
            compiler_params=pltpu.CompilerParams(
                dimension_semantics=("parallel",),
                vmem_limit_bytes=32 * 2**20),
        )(out5, out5, out5, out5,
          params["proj_wr"], params["proj_br"],
          params["proj_wi"], params["proj_bi"])

    return [ro[:T], io[:T]]


# -----------------------------------------------------------------------------
# Pure-JAX reference (for correctness check). Same fused-gate weight layout.
# -----------------------------------------------------------------------------
def _lstm_ref(x, w_ih, w_hh, b):
    H = w_hh.shape[0]

    def step(carry, xt):
        h, c = carry
        gates = xt @ w_ih + h @ w_hh + b          # (N, 4H), gate order i|f|g|o
        i = jax.nn.sigmoid(gates[:, 0:H])
        f = jax.nn.sigmoid(gates[:, H:2 * H])
        g = jnp.tanh(gates[:, 2 * H:3 * H])
        o = jax.nn.sigmoid(gates[:, 3 * H:4 * H])
        c = f * c + i * g
        h = o * jnp.tanh(c)
        return (h, c), h

    h0 = jnp.zeros((x.shape[1], H), jnp.float32)
    _, hs = jax.lax.scan(step, (h0, h0), x)
    return hs


def _ref_forward(params, real, imag):
    r2r = _lstm_ref(real, params["w_ih"][0], params["w_hh"][0], params["b"][0])
    i2r = _lstm_ref(imag, params["w_ih"][0], params["w_hh"][0], params["b"][0])
    r2i = _lstm_ref(real, params["w_ih"][1], params["w_hh"][1], params["b"][1])
    i2i = _lstm_ref(imag, params["w_ih"][1], params["w_hh"][1], params["b"][1])
    real_out = r2r - i2i
    imag_out = i2r + r2i
    if params.get("proj_wr") is not None:
        real_out = real_out @ params["proj_wr"] + params["proj_br"][0]
        imag_out = imag_out @ params["proj_wi"] + params["proj_bi"][0]
    return [real_out, imag_out]


# -----------------------------------------------------------------------------
# Deterministic parameter init (PyTorch-style uniform(-k, k), k = 1/sqrt(H)).
# Weights stored pre-fused: gates concatenated i|f|g|o along the last axis,
# real/imag weight sets stacked along a leading axis of size 2.
# -----------------------------------------------------------------------------
def init_params(key, input_size, hidden_size, projection_dim=None):
    D = input_size // 2
    H = hidden_size // 2
    k = 1.0 / jnp.sqrt(jnp.float32(H))
    keys = jax.random.split(key, 12)
    u = lambda kk, shape: jax.random.uniform(kk, shape, jnp.float32, -k, k)

    params = {
        "w_ih": u(keys[0], (2, D, 4 * H)),                  # [real, imag] lstm
        "w_hh": u(keys[1], (2, H, 4 * H)),
        "b": u(keys[2], (2, 1, 4 * H)) + u(keys[3], (2, 1, 4 * H)),  # b_ih+b_hh
        "proj_wr": None, "proj_br": None, "proj_wi": None, "proj_bi": None,
    }
    if projection_dim is not None:
        P = projection_dim // 2
        params["proj_wr"] = u(keys[8], (H, P))              # Linear W, transposed
        params["proj_br"] = u(keys[9], (1, P))
        params["proj_wi"] = u(keys[10], (H, P))
        params["proj_bi"] = u(keys[11], (1, P))
    return params


if __name__ == "__main__":
    # Small shapes: T=8, B=2, input_size=32 (D=16), hidden=32 (H=16), proj=32.
    T, B = 8, 2
    input_size, hidden_size, projection_dim = 32, 32, 32

    key = jax.random.PRNGKey(0)
    k_in_r, k_in_i, k_par = jax.random.split(key, 3)
    real = jax.random.normal(k_in_r, (T, B, input_size // 2), jnp.float32)
    imag = jax.random.normal(k_in_i, (T, B, input_size // 2), jnp.float32)

    # Path with projection Linear (f32 matmul operands -> tight tolerance).
    params = init_params(k_par, input_size, hidden_size, projection_dim)
    real_out, imag_out = navie_complex_lstm_forward(params, real, imag)
    jax.block_until_ready(real_out)
    jax.block_until_ready(imag_out)
    ref_real, ref_imag = _ref_forward(params, real, imag)
    assert jnp.allclose(real_out, ref_real, atol=1e-4, rtol=1e-4)
    assert jnp.allclose(imag_out, ref_imag, atol=1e-4, rtol=1e-4)

    # Path without projection (exercises the plain combine kernel).
    params_np = init_params(k_par, input_size, hidden_size, None)
    ro2, io2 = navie_complex_lstm_forward(params_np, real, imag)
    jax.block_until_ready(ro2)
    jax.block_until_ready(io2)
    ref_r2, ref_i2 = _ref_forward(params_np, real, imag)
    assert jnp.allclose(ro2, ref_r2, atol=1e-4, rtol=1e-4)
    assert jnp.allclose(io2, ref_i2, atol=1e-4, rtol=1e-4)

    # bf16 matmul-operand path (v6e/v7x MXU throughput), loose tolerance.
    ro3, io3 = navie_complex_lstm_forward(params, real, imag,
                                          compute_dtype=jnp.bfloat16)
    jax.block_until_ready(ro3)
    jax.block_until_ready(io3)
    assert jnp.allclose(ro3, ref_real, atol=1e-1, rtol=1e-1)
    assert jnp.allclose(io3, ref_imag, atol=1e-1, rtol=1e-1)

    print("KERNEL_OK")
</pallas_src>

<mosaic_0001>
module attributes {stable_mosaic.version = 11 : i64} {
  func.func @_lstm_kernel(%arg0: i32, %arg1: i32, %arg2: memref<32x16xf32, #tpu.memory_space<vmem>>, %arg3: memref<1x16x64xf32, #tpu.memory_space<vmem>>, %arg4: memref<1x16x64xf32, #tpu.memory_space<vmem>>, %arg5: memref<1x1x64xf32, #tpu.memory_space<vmem>>, %arg6: memref<1x8x4x16xf32, #tpu.memory_space<vmem>>, %arg7: memref<4x16xf32, #tpu.memory_space<vmem>>, %arg8: memref<4x16xf32, #tpu.memory_space<vmem>>) attributes {dimension_semantics = [#tpu.dimension_semantics<parallel>, #tpu.dimension_semantics<arbitrary>], iteration_bounds = array<i64: 2, 1>, scalar_prefetch = 0 : i64, scratch_operands = 2 : i64, tpu.core_type = #tpu.core_type<tc>, window_params = [{transform_indices = @transform_0, window_bounds = array<i64: 32, 16>}, {transform_indices = @transform_1, window_bounds = array<i64: 1, 16, 64>}, {transform_indices = @transform_2, window_bounds = array<i64: 1, 16, 64>}, {transform_indices = @transform_3, window_bounds = array<i64: 1, 1, 64>}, {transform_indices = @transform_4, window_bounds = array<i64: 1, 8, 4, 16>}]} {
    %c0_i32 = arith.constant 0 : i32
    %0 = arith.cmpi eq, %arg1, %c0_i32 : i32
    %1 = arith.extui %0 : i1 to i32
    %c0_i32_0 = arith.constant 0 : i32
    %2 = arith.cmpi ne, %1, %c0_i32_0 : i32
    scf.if %2 {
      %cst_100 = arith.constant 0.000000e+00 : f32
      %241 = vector.broadcast %cst_100 : f32 to vector<4x16xf32>
      %c0_101 = arith.constant 0 : index
      %c0_102 = arith.constant 0 : index
      %242 = vector.load %arg7[%c0_101, %c0_102] : memref<4x16xf32, #tpu.memory_space<vmem>>, vector<4x16xf32>
      tpu.vector_store %arg7[%c0_101, %c0_102], %241 {strides = array<i32>} : memref<4x16xf32, #tpu.memory_space<vmem>>, vector<4x16xf32>,
      %cst_103 = arith.constant 0.000000e+00 : f32
      %243 = vector.broadcast %cst_103 : f32 to vector<4x16xf32>
      %c0_104 = arith.constant 0 : index
      %c0_105 = arith.constant 0 : index
      %244 = vector.load %arg8[%c0_104, %c0_105] : memref<4x16xf32, #tpu.memory_space<vmem>>, vector<4x16xf32>
      tpu.vector_store %arg8[%c0_104, %c0_105], %243 {strides = array<i32>} : memref<4x16xf32, #tpu.memory_space<vmem>>, vector<4x16xf32>,
    } else {
    }
    %c0 = arith.constant 0 : index
    %c0_1 = arith.constant 0 : index
    %3 = vector.load %arg2[%c0, %c0_1] : memref<32x16xf32, #tpu.memory_space<vmem>>, vector<32x16xf32>
    %c0_2 = arith.constant 0 : index
    %c0_3 = arith.constant 0 : index
    %c0_4 = arith.constant 0 : index
    %4 = vector.load %arg3[%c0_2, %c0_3, %c0_4] : memref<1x16x64xf32, #tpu.memory_space<vmem>>, vector<1x16x64xf32>
    %5 = vector.shape_cast %4 : vector<1x16x64xf32> to vector<16x64xf32>
    %cst = arith.constant dense<0.000000e+00> : vector<32x64xf32>
    %6 = tpu.matmul %3, %5, %cst {dimension_numbers = #tpu.dot_dimension_numbers<[1], [0], [0], [1], [0, 0, 1, 1], [], []>} : vector<32x16xf32>, vector<16x64xf32>, vector<32x64xf32> -> vector<32x64xf32>
    %c0_5 = arith.constant 0 : index
    %c0_6 = arith.constant 0 : index
    %c0_7 = arith.constant 0 : index
    %7 = vector.load %arg5[%c0_5, %c0_6, %c0_7] : memref<1x1x64xf32, #tpu.memory_space<vmem>>, vector<1x1x64xf32>
    %8 = vector.shape_cast %7 : vector<1x1x64xf32> to vector<1x64xf32>
    %9 = vector.broadcast %8 : vector<1x64xf32> to vector<32x64xf32>
    %10 = arith.addf %6, %9 : vector<32x64xf32>
    %c0_8 = arith.constant 0 : index
    %c0_9 = arith.constant 0 : index
    %c0_10 = arith.constant 0 : index
    %11 = vector.load %arg4[%c0_8, %c0_9, %c0_10] : memref<1x16x64xf32, #tpu.memory_space<vmem>>, vector<1x16x64xf32>
    %12 = vector.shape_cast %11 : vector<1x16x64xf32> to vector<16x64xf32>
    %c0_11 = arith.constant 0 : index
    %c0_12 = arith.constant 0 : index
    %13 = vector.load %arg7[%c0_11, %c0_12] : memref<4x16xf32, #tpu.memory_space<vmem>>, vector<4x16xf32>
    %c0_13 = arith.constant 0 : index
    %c0_14 = arith.constant 0 : index
    %14 = vector.load %arg8[%c0_13, %c0_14] : memref<4x16xf32, #tpu.memory_space<vmem>>, vector<4x16xf32>
    %15 = vector.extract_strided_slice %10 {offsets = [0, 0], sizes = [4, 64], strides = [1, 1]} : vector<32x64xf32> to vector<4x64xf32>
    %cst_15 = arith.constant dense<0.000000e+00> : vector<4x64xf32>
    %16 = tpu.matmul %13, %12, %cst_15 {dimension_numbers = #tpu.dot_dimension_numbers<[1], [0], [0], [1], [0, 0, 1, 1], [], []>} : vector<4x16xf32>, vector<16x64xf32>, vector<4x64xf32> -> vector<4x64xf32>
    %17 = arith.addf %15, %16 : vector<4x64xf32>
    %18 = math.tanh %17 : vector<4x64xf32>
    %19 = vector.extract_strided_slice %18 {offsets = [0, 0], sizes = [4, 16], strides = [1, 1]} : vector<4x64xf32> to vector<4x16xf32>
    %cst_16 = arith.constant 5.000000e-01 : f32
    %20 = vector.broadcast %cst_16 : f32 to vector<4x16xf32>
    %21 = arith.mulf %20, %19 : vector<4x16xf32>
    %cst_17 = arith.constant 5.000000e-01 : f32
    %22 = vector.broadcast %cst_17 : f32 to vector<4x16xf32>
    %23 = arith.addf %21, %22 : vector<4x16xf32>
    %24 = vector.extract_strided_slice %18 {offsets = [0, 16], sizes = [4, 16], strides = [1, 1]} : vector<4x64xf32> to vector<4x16xf32>
    %cst_18 = arith.constant 5.000000e-01 : f32
    %25 = vector.broadcast %cst_18 : f32 to vector<4x16xf32>
    %26 = arith.mulf %25, %24 : vector<4x16xf32>
    %cst_19 = arith.constant 5.000000e-01 : f32
    %27 = vector.broadcast %cst_19 : f32 to vector<4x16xf32>
    %28 = arith.addf %26, %27 : vector<4x16xf32>
    %29 = vector.extract_strided_slice %18 {offsets = [0, 32], sizes = [4, 16], strides = [1, 1]} : vector<4x64xf32> to vector<4x16xf32>
    %30 = vector.extract_strided_slice %18 {offsets = [0, 48], sizes = [4, 16], strides = [1, 1]} : vector<4x64xf32> to vector<4x16xf32>
    %cst_20 = arith.constant 5.000000e-01 : f32
    %31 = vector.broadcast %cst_20 : f32 to vector<4x16xf32>
    %32 = arith.mulf %31, %30 : vector<4x16xf32>
    %cst_21 = arith.constant 5.000000e-01 : f32
    %33 = vector.broadcast %cst_21 : f32 to vector<4x16xf32>
    %34 = arith.addf %32, %33 : vector<4x16xf32>
    %35 = arith.mulf %28, %14 : vector<4x16xf32>
    %36 = arith.mulf %23, %29 : vector<4x16xf32>
    %37 = arith.addf %35, %36 : vector<4x16xf32>
    %38 = math.tanh %37 : vector<4x16xf32>
    %39 = arith.mulf %34, %38 : vector<4x16xf32>
    %c0_22 = arith.constant 0 : index
    %c0_23 = arith.constant 0 : index
    %c0_24 = arith.constant 0 : index
    %c0_25 = arith.constant 0 : index
    %40 = vector.load %arg6[%c0_22, %c0_23, %c0_24, %c0_25] : memref<1x8x4x16xf32, #tpu.memory_space<vmem>>, vector<1x1x4x16xf32>
    %41 = vector.shape_cast %40 : vector<1x1x4x16xf32> to vector<4x16xf32>
    %42 = vector.shape_cast %39 : vector<4x16xf32> to vector<1x1x4x16xf32>
    tpu.vector_store %arg6[%c0_22, %c0_23, %c0_24, %c0_25], %42 {strides = array<i32>} : memref<1x8x4x16xf32, #tpu.memory_space<vmem>>, vector<1x1x4x16xf32>,
    %43 = vector.extract_strided_slice %10 {offsets = [4, 0], sizes = [4, 64], strides = [1, 1]} : vector<32x64xf32> to vector<4x64xf32>
    %cst_26 = arith.constant dense<0.000000e+00> : vector<4x64xf32>
    %44 = tpu.matmul %39, %12, %cst_26 {dimension_numbers = #tpu.dot_dimension_numbers<[1], [0], [0], [1], [0, 0, 1, 1], [], []>} : vector<4x16xf32>, vector<16x64xf32>, vector<4x64xf32> -> vector<4x64xf32>
    %45 = arith.addf %43, %44 : vector<4x64xf32>
    %46 = math.tanh %45 : vector<4x64xf32>
    %47 = vector.extract_strided_slice %46 {offsets = [0, 0], sizes = [4, 16], strides = [1, 1]} : vector<4x64xf32> to vector<4x16xf32>
    %cst_27 = arith.constant 5.000000e-01 : f32
    %48 = vector.broadcast %cst_27 : f32 to vector<4x16xf32>
    %49 = arith.mulf %48, %47 : vector<4x16xf32>
    %cst_28 = arith.constant 5.000000e-01 : f32
    %50 = vector.broadcast %cst_28 : f32 to vector<4x16xf32>
    %51 = arith.addf %49, %50 : vector<4x16xf32>
    %52 = vector.extract_strided_slice %46 {offsets = [0, 16], sizes = [4, 16], strides = [1, 1]} : vector<4x64xf32> to vector<4x16xf32>
    %cst_29 = arith.constant 5.000000e-01 : f32
    %53 = vector.broadcast %cst_29 : f32 to vector<4x16xf32>
    %54 = arith.mulf %53, %52 : vector<4x16xf32>
    %cst_30 = arith.constant 5.000000e-01 : f32
    %55 = vector.broadcast %cst_30 : f32 to vector<4x16xf32>
    %56 = arith.addf %54, %55 : vector<4x16xf32>
    %57 = vector.extract_strided_slice %46 {offsets = [0, 32], sizes = [4, 16], strides = [1, 1]} : vector<4x64xf32> to vector<4x16xf32>
    %58 = vector.extract_strided_slice %46 {offsets = [0, 48], sizes = [4, 16], strides = [1, 1]} : vector<4x64xf32> to vector<4x16xf32>
    %cst_31 = arith.constant 5.000000e-01 : f32
    %59 = vector.broadcast %cst_31 : f32 to vector<4x16xf32>
    %60 = arith.mulf %59, %58 : vector<4x16xf32>
    %cst_32 = arith.constant 5.000000e-01 : f32
    %61 = vector.broadcast %cst_32 : f32 to vector<4x16xf32>
    %62 = arith.addf %60, %61 : vector<4x16xf32>
    %63 = arith.mulf %56, %37 : vector<4x16xf32>
    %64 = arith.mulf %51, %57 : vector<4x16xf32>
    %65 = arith.addf %63, %64 : vector<4x16xf32>
    %66 = math.tanh %65 : vector<4x16xf32>
    %67 = arith.mulf %62, %66 : vector<4x16xf32>
    %c0_33 = arith.constant 0 : index
    %c1 = arith.constant 1 : index
    %c0_34 = arith.constant 0 : index
    %c0_35 = arith.constant 0 : index
    %68 = vector.load %arg6[%c0_33, %c1, %c0_34, %c0_35] : memref<1x8x4x16xf32, #tpu.memory_space<vmem>>, vector<1x1x4x16xf32>
    %69 = vector.shape_cast %68 : vector<1x1x4x16xf32> to vector<4x16xf32>
    %70 = vector.shape_cast %67 : vector<4x16xf32> to vector<1x1x4x16xf32>
    tpu.vector_store %arg6[%c0_33, %c1, %c0_34, %c0_35], %70 {strides = array<i32>} : memref<1x8x4x16xf32, #tpu.memory_space<vmem>>, vector<1x1x4x16xf32>,
    %71 = vector.extract_strided_slice %10 {offsets = [8, 0], sizes = [4, 64], strides = [1, 1]} : vector<32x64xf32> to vector<4x64xf32>
    %cst_36 = arith.constant dense<0.000000e+00> : vector<4x64xf32>
    %72 = tpu.matmul %67, %12, %cst_36 {dimension_numbers = #tpu.dot_dimension_numbers<[1], [0], [0], [1], [0, 0, 1, 1], [], []>} : vector<4x16xf32>, vector<16x64xf32>, vector<4x64xf32> -> vector<4x64xf32>
    %73 = arith.addf %71, %72 : vector<4x64xf32>
    %74 = math.tanh %73 : vector<4x64xf32>
    %75 = vector.extract_strided_slice %74 {offsets = [0, 0], sizes = [4, 16], strides = [1, 1]} : vector<4x64xf32> to vector<4x16xf32>
    %cst_37 = arith.constant 5.000000e-01 : f32
    %76 = vector.broadcast %cst_37 : f32 to vector<4x16xf32>
    %77 = arith.mulf %76, %75 : vector<4x16xf32>
    %cst_38 = arith.constant 5.000000e-01 : f32
    %78 = vector.broadcast %cst_38 : f32 to vector<4x16xf32>
    %79 = arith.addf %77, %78 : vector<4x16xf32>
    %80 = vector.extract_strided_slice %74 {offsets = [0, 16], sizes = [4, 16], strides = [1, 1]} : vector<4x64xf32> to vector<4x16xf32>
    %cst_39 = arith.constant 5.000000e-01 : f32
    %81 = vector.broadcast %cst_39 : f32 to vector<4x16xf32>
    %82 = arith.mulf %81, %80 : vector<4x16xf32>
    %cst_40 = arith.constant 5.000000e-01 : f32
    %83 = vector.broadcast %cst_40 : f32 to vector<4x16xf32>
    %84 = arith.addf %82, %83 : vector<4x16xf32>
    %85 = vector.extract_strided_slice %74 {offsets = [0, 32], sizes = [4, 16], strides = [1, 1]} : vector<4x64xf32> to vector<4x16xf32>
    %86 = vector.extract_strided_slice %74 {offsets = [0, 48], sizes = [4, 16], strides = [1, 1]} : vector<4x64xf32> to vector<4x16xf32>
    %cst_41 = arith.constant 5.000000e-01 : f32
    %87 = vector.broadcast %cst_41 : f32 to vector<4x16xf32>
    %88 = arith.mulf %87, %86 : vector<4x16xf32>
    %cst_42 = arith.constant 5.000000e-01 : f32
    %89 = vector.broadcast %cst_42 : f32 to vector<4x16xf32>
    %90 = arith.addf %88, %89 : vector<4x16xf32>
    %91 = arith.mulf %84, %65 : vector<4x16xf32>
    %92 = arith.mulf %79, %85 : vector<4x16xf32>
    %93 = arith.addf %91, %92 : vector<4x16xf32>
    %94 = math.tanh %93 : vector<4x16xf32>
    %95 = arith.mulf %90, %94 : vector<4x16xf32>
    %c0_43 = arith.constant 0 : index
    %c2 = arith.constant 2 : index
    %c0_44 = arith.constant 0 : index
    %c0_45 = arith.constant 0 : index
    %96 = vector.load %arg6[%c0_43, %c2, %c0_44, %c0_45] : memref<1x8x4x16xf32, #tpu.memory_space<vmem>>, vector<1x1x4x16xf32>
    %97 = vector.shape_cast %96 : vector<1x1x4x16xf32> to vector<4x16xf32>
    %98 = vector.shape_cast %95 : vector<4x16xf32> to vector<1x1x4x16xf32>
    tpu.vector_store %arg6[%c0_43, %c2, %c0_44, %c0_45], %98 {strides = array<i32>} : memref<1x8x4x16xf32, #tpu.memory_space<vmem>>, vector<1x1x4x16xf32>,
    %99 = vector.extract_strided_slice %10 {offsets = [12, 0], sizes = [4, 64], strides = [1, 1]} : vector<32x64xf32> to vector<4x64xf32>
    %cst_46 = arith.constant dense<0.000000e+00> : vector<4x64xf32>
    %100 = tpu.matmul %95, %12, %cst_46 {dimension_numbers = #tpu.dot_dimension_numbers<[1], [0], [0], [1], [0, 0, 1, 1], [], []>} : vector<4x16xf32>, vector<16x64xf32>, vector<4x64xf32> -> vector<4x64xf32>
    %101 = arith.addf %99, %100 : vector<4x64xf32>
    %102 = math.tanh %101 : vector<4x64xf32>
    %103 = vector.extract_strided_slice %102 {offsets = [0, 0], sizes = [4, 16], strides = [1, 1]} : vector<4x64xf32> to vector<4x16xf32>
    %cst_47 = arith.constant 5.000000e-01 : f32
    %104 = vector.broadcast %cst_47 : f32 to vector<4x16xf32>
    %105 = arith.mulf %104, %103 : vector<4x16xf32>
    %cst_48 = arith.constant 5.000000e-01 : f32
    %106 = vector.broadcast %cst_48 : f32 to vector<4x16xf32>
    %107 = arith.addf %105, %106 : vector<4x16xf32>
    %108 = vector.extract_strided_slice %102 {offsets = [0, 16], sizes = [4, 16], strides = [1, 1]} : vector<4x64xf32> to vector<4x16xf32>
    %cst_49 = arith.constant 5.000000e-01 : f32
    %109 = vector.broadcast %cst_49 : f32 to vector<4x16xf32>
    %110 = arith.mulf %109, %108 : vector<4x16xf32>
    %cst_50 = arith.constant 5.000000e-01 : f32
    %111 = vector.broadcast %cst_50 : f32 to vector<4x16xf32>
    %112 = arith.addf %110, %111 : vector<4x16xf32>
    %113 = vector.extract_strided_slice %102 {offsets = [0, 32], sizes = [4, 16], strides = [1, 1]} : vector<4x64xf32> to vector<4x16xf32>
    %114 = vector.extract_strided_slice %102 {offsets = [0, 48], sizes = [4, 16], strides = [1, 1]} : vector<4x64xf32> to vector<4x16xf32>
    %cst_51 = arith.constant 5.000000e-01 : f32
    %115 = vector.broadcast %cst_51 : f32 to vector<4x16xf32>
    %116 = arith.mulf %115, %114 : vector<4x16xf32>
    %cst_52 = arith.constant 5.000000e-01 : f32
    %117 = vector.broadcast %cst_52 : f32 to vector<4x16xf32>
    %118 = arith.addf %116, %117 : vector<4x16xf32>
    %119 = arith.mulf %112, %93 : vector<4x16xf32>
    %120 = arith.mulf %107, %113 : vector<4x16xf32>
    %121 = arith.addf %119, %120 : vector<4x16xf32>
    %122 = math.tanh %121 : vector<4x16xf32>
    %123 = arith.mulf %118, %122 : vector<4x16xf32>
    %c0_53 = arith.constant 0 : index
    %c3 = arith.constant 3 : index
    %c0_54 = arith.constant 0 : index
    %c0_55 = arith.constant 0 : index
    %124 = vector.load %arg6[%c0_53, %c3, %c0_54, %c0_55] : memref<1x8x4x16xf32, #tpu.memory_space<vmem>>, vector<1x1x4x16xf32>
    %125 = vector.shape_cast %124 : vector<1x1x4x16xf32> to vector<4x16xf32>
    %126 = vector.shape_cast %123 : vector<4x16xf32> to vector<1x1x4x16xf32>
    tpu.vector_store %arg6[%c0_53, %c3, %c0_54, %c0_55], %126 {strides = array<i32>} : memref<1x8x4x16xf32, #tpu.memory_space<vmem>>, vector<1x1x4x16xf32>,
    %127 = vector.extract_strided_slice %10 {offsets = [16, 0], sizes = [4, 64], strides = [1, 1]} : vector<32x64xf32> to vector<4x64xf32>
    %cst_56 = arith.constant dense<0.000000e+00> : vector<4x64xf32>
    %128 = tpu.matmul %123, %12, %cst_56 {dimension_numbers = #tpu.dot_dimension_numbers<[1], [0], [0], [1], [0, 0, 1, 1], [], []>} : vector<4x16xf32>, vector<16x64xf32>, vector<4x64xf32> -> vector<4x64xf32>
    %129 = arith.addf %127, %128 : vector<4x64xf32>
    %130 = math.tanh %129 : vector<4x64xf32>
    %131 = vector.extract_strided_slice %130 {offsets = [0, 0], sizes = [4, 16], strides = [1, 1]} : vector<4x64xf32> to vector<4x16xf32>
    %cst_57 = arith.constant 5.000000e-01 : f32
    %132 = vector.broadcast %cst_57 : f32 to vector<4x16xf32>
    %133 = arith.mulf %132, %131 : vector<4x16xf32>
    %cst_58 = arith.constant 5.000000e-01 : f32
    %134 = vector.broadcast %cst_58 : f32 to vector<4x16xf32>
    %135 = arith.addf %133, %134 : vector<4x16xf32>
    %136 = vector.extract_strided_slice %130 {offsets = [0, 16], sizes = [4, 16], strides = [1, 1]} : vector<4x64xf32> to vector<4x16xf32>
    %cst_59 = arith.constant 5.000000e-01 : f32
    %137 = vector.broadcast %cst_59 : f32 to vector<4x16xf32>
    %138 = arith.mulf %137, %136 : vector<4x16xf32>
    %cst_60 = arith.constant 5.000000e-01 : f32
    %139 = vector.broadcast %cst_60 : f32 to vector<4x16xf32>
    %140 = arith.addf %138, %139 : vector<4x16xf32>
    %141 = vector.extract_strided_slice %130 {offsets = [0, 32], sizes = [4, 16], strides = [1, 1]} : vector<4x64xf32> to vector<4x16xf32>
    %142 = vector.extract_strided_slice %130 {offsets = [0, 48], sizes = [4, 16], strides = [1, 1]} : vector<4x64xf32> to vector<4x16xf32>
    %cst_61 = arith.constant 5.000000e-01 : f32
    %143 = vector.broadcast %cst_61 : f32 to vector<4x16xf32>
    %144 = arith.mulf %143, %142 : vector<4x16xf32>
    %cst_62 = arith.constant 5.000000e-01 : f32
    %145 = vector.broadcast %cst_62 : f32 to vector<4x16xf32>
    %146 = arith.addf %144, %145 : vector<4x16xf32>
    %147 = arith.mulf %140, %121 : vector<4x16xf32>
    %148 = arith.mulf %135, %141 : vector<4x16xf32>
    %149 = arith.addf %147, %148 : vector<4x16xf32>
    %150 = math.tanh %149 : vector<4x16xf32>
    %151 = arith.mulf %146, %150 : vector<4x16xf32>
    %c0_63 = arith.constant 0 : index
    %c4 = arith.constant 4 : index
    %c0_64 = arith.constant 0 : index
    %c0_65 = arith.constant 0 : index
    %152 = vector.load %arg6[%c0_63, %c4, %c0_64, %c0_65] : memref<1x8x4x16xf32, #tpu.memory_space<vmem>>, vector<1x1x4x16xf32>
    %153 = vector.shape_cast %152 : vector<1x1x4x16xf32> to vector<4x16xf32>
    %154 = vector.shape_cast %151 : vector<4x16xf32> to vector<1x1x4x16xf32>
    tpu.vector_store %arg6[%c0_63, %c4, %c0_64, %c0_65], %154 {strides = array<i32>} : memref<1x8x4x16xf32, #tpu.memory_space<vmem>>, vector<1x1x4x16xf32>,
    %155 = vector.extract_strided_slice %10 {offsets = [20, 0], sizes = [4, 64], strides = [1, 1]} : vector<32x64xf32> to vector<4x64xf32>
    %cst_66 = arith.constant dense<0.000000e+00> : vector<4x64xf32>
    %156 = tpu.matmul %151, %12, %cst_66 {dimension_numbers = #tpu.dot_dimension_numbers<[1], [0], [0], [1], [0, 0, 1, 1], [], []>} : vector<4x16xf32>, vector<16x64xf32>, vector<4x64xf32> -> vector<4x64xf32>
    %157 = arith.addf %155, %156 : vector<4x64xf32>
    %158 = math.tanh %157 : vector<4x64xf32>
    %159 = vector.extract_strided_slice %158 {offsets = [0, 0], sizes = [4, 16], strides = [1, 1]} : vector<4x64xf32> to vector<4x16xf32>
    %cst_67 = arith.constant 5.000000e-01 : f32
    %160 = vector.broadcast %cst_67 : f32 to vector<4x16xf32>
    %161 = arith.mulf %160, %159 : vector<4x16xf32>
    %cst_68 = arith.constant 5.000000e-01 : f32
    %162 = vector.broadcast %cst_68 : f32 to vector<4x16xf32>
    %163 = arith.addf %161, %162 : vector<4x16xf32>
    %164 = vector.extract_strided_slice %158 {offsets = [0, 16], sizes = [4, 16], strides = [1, 1]} : vector<4x64xf32> to vector<4x16xf32>
    %cst_69 = arith.constant 5.000000e-01 : f32
    %165 = vector.broadcast %cst_69 : f32 to vector<4x16xf32>
    %166 = arith.mulf %165, %164 : vector<4x16xf32>
    %cst_70 = arith.constant 5.000000e-01 : f32
    %167 = vector.broadcast %cst_70 : f32 to vector<4x16xf32>
    %168 = arith.addf %166, %167 : vector<4x16xf32>
    %169 = vector.extract_strided_slice %158 {offsets = [0, 32], sizes = [4, 16], strides = [1, 1]} : vector<4x64xf32> to vector<4x16xf32>
    %170 = vector.extract_strided_slice %158 {offsets = [0, 48], sizes = [4, 16], strides = [1, 1]} : vector<4x64xf32> to vector<4x16xf32>
    %cst_71 = arith.constant 5.000000e-01 : f32
    %171 = vector.broadcast %cst_71 : f32 to vector<4x16xf32>
    %172 = arith.mulf %171, %170 : vector<4x16xf32>
    %cst_72 = arith.constant 5.000000e-01 : f32
    %173 = vector.broadcast %cst_72 : f32 to vector<4x16xf32>
    %174 = arith.addf %172, %173 : vector<4x16xf32>
    %175 = arith.mulf %168, %149 : vector<4x16xf32>
    %176 = arith.mulf %163, %169 : vector<4x16xf32>
    %177 = arith.addf %175, %176 : vector<4x16xf32>
    %178 = math.tanh %177 : vector<4x16xf32>
    %179 = arith.mulf %174, %178 : vector<4x16xf32>
    %c0_73 = arith.constant 0 : index
    %c5 = arith.constant 5 : index
    %c0_74 = arith.constant 0 : index
    %c0_75 = arith.constant 0 : index
    %180 = vector.load %arg6[%c0_73, %c5, %c0_74, %c0_75] : memref<1x8x4x16xf32, #tpu.memory_space<vmem>>, vector<1x1x4x16xf32>
    %181 = vector.shape_cast %180 : vector<1x1x4x16xf32> to vector<4x16xf32>
    %182 = vector.shape_cast %179 : vector<4x16xf32> to vector<1x1x4x16xf32>
    tpu.vector_store %arg6[%c0_73, %c5, %c0_74, %c0_75], %182 {strides = array<i32>} : memref<1x8x4x16xf32, #tpu.memory_space<vmem>>, vector<1x1x4x16xf32>,
    %183 = vector.extract_strided_slice %10 {offsets = [24, 0], sizes = [4, 64], strides = [1, 1]} : vector<32x64xf32> to vector<4x64xf32>
    %cst_76 = arith.constant dense<0.000000e+00> : vector<4x64xf32>
    %184 = tpu.matmul %179, %12, %cst_76 {dimension_numbers = #tpu.dot_dimension_numbers<[1], [0], [0], [1], [0, 0, 1, 1], [], []>} : vector<4x16xf32>, vector<16x64xf32>, vector<4x64xf32> -> vector<4x64xf32>
    %185 = arith.addf %183, %184 : vector<4x64xf32>
    %186 = math.tanh %185 : vector<4x64xf32>
    %187 = vector.extract_strided_slice %186 {offsets = [0, 0], sizes = [4, 16], strides = [1, 1]} : vector<4x64xf32> to vector<4x16xf32>
    %cst_77 = arith.constant 5.000000e-01 : f32
    %188 = vector.broadcast %cst_77 : f32 to vector<4x16xf32>
    %189 = arith.mulf %188, %187 : vector<4x16xf32>
    %cst_78 = arith.constant 5.000000e-01 : f32
    %190 = vector.broadcast %cst_78 : f32 to vector<4x16xf32>
    %191 = arith.addf %189, %190 : vector<4x16xf32>
    %192 = vector.extract_strided_slice %186 {offsets = [0, 16], sizes = [4, 16], strides = [1, 1]} : vector<4x64xf32> to vector<4x16xf32>
    %cst_79 = arith.constant 5.000000e-01 : f32
    %193 = vector.broadcast %cst_79 : f32 to vector<4x16xf32>
    %194 = arith.mulf %193, %192 : vector<4x16xf32>
    %cst_80 = arith.constant 5.000000e-01 : f32
    %195 = vector.broadcast %cst_80 : f32 to vector<4x16xf32>
    %196 = arith.addf %194, %195 : vector<4x16xf32>
    %197 = vector.extract_strided_slice %186 {offsets = [0, 32], sizes = [4, 16], strides = [1, 1]} : vector<4x64xf32> to vector<4x16xf32>
    %198 = vector.extract_strided_slice %186 {offsets = [0, 48], sizes = [4, 16], strides = [1, 1]} : vector<4x64xf32> to vector<4x16xf32>
    %cst_81 = arith.constant 5.000000e-01 : f32
    %199 = vector.broadcast %cst_81 : f32 to vector<4x16xf32>
    %200 = arith.mulf %199, %198 : vector<4x16xf32>
    %cst_82 = arith.constant 5.000000e-01 : f32
    %201 = vector.broadcast %cst_82 : f32 to vector<4x16xf32>
    %202 = arith.addf %200, %201 : vector<4x16xf32>
    %203 = arith.mulf %196, %177 : vector<4x16xf32>
    %204 = arith.mulf %191, %197 : vector<4x16xf32>
    %205 = arith.addf %203, %204 : vector<4x16xf32>
    %206 = math.tanh %205 : vector<4x16xf32>
    %207 = arith.mulf %202, %206 : vector<4x16xf32>
    %c0_83 = arith.constant 0 : index
    %c6 = arith.constant 6 : index
    %c0_84 = arith.constant 0 : index
    %c0_85 = arith.constant 0 : index
    %208 = vector.load %arg6[%c0_83, %c6, %c0_84, %c0_85] : memref<1x8x4x16xf32, #tpu.memory_space<vmem>>, vector<1x1x4x16xf32>
    %209 = vector.shape_cast %208 : vector<1x1x4x16xf32> to vector<4x16xf32>
    %210 = vector.shape_cast %207 : vector<4x16xf32> to vector<1x1x4x16xf32>
    tpu.vector_store %arg6[%c0_83, %c6, %c0_84, %c0_85], %210 {strides = array<i32>} : memref<1x8x4x16xf32, #tpu.memory_space<vmem>>, vector<1x1x4x16xf32>,
    %211 = vector.extract_strided_slice %10 {offsets = [28, 0], sizes = [4, 64], strides = [1, 1]} : vector<32x64xf32> to vector<4x64xf32>
    %cst_86 = arith.constant dense<0.000000e+00> : vector<4x64xf32>
    %212 = tpu.matmul %207, %12, %cst_86 {dimension_numbers = #tpu.dot_dimension_numbers<[1], [0], [0], [1], [0, 0, 1, 1], [], []>} : vector<4x16xf32>, vector<16x64xf32>, vector<4x64xf32> -> vector<4x64xf32>
    %213 = arith.addf %211, %212 : vector<4x64xf32>
    %214 = math.tanh %213 : vector<4x64xf32>
    %215 = vector.extract_strided_slice %214 {offsets = [0, 0], sizes = [4, 16], strides = [1, 1]} : vector<4x64xf32> to vector<4x16xf32>
    %cst_87 = arith.constant 5.000000e-01 : f32
    %216 = vector.broadcast %cst_87 : f32 to vector<4x16xf32>
    %217 = arith.mulf %216, %215 : vector<4x16xf32>
    %cst_88 = arith.constant 5.000000e-01 : f32
    %218 = vector.broadcast %cst_88 : f32 to vector<4x16xf32>
    %219 = arith.addf %217, %218 : vector<4x16xf32>
    %220 = vector.extract_strided_slice %214 {offsets = [0, 16], sizes = [4, 16], strides = [1, 1]} : vector<4x64xf32> to vector<4x16xf32>
    %cst_89 = arith.constant 5.000000e-01 : f32
    %221 = vector.broadcast %cst_89 : f32 to vector<4x16xf32>
    %222 = arith.mulf %221, %220 : vector<4x16xf32>
    %cst_90 = arith.constant 5.000000e-01 : f32
    %223 = vector.broadcast %cst_90 : f32 to vector<4x16xf32>
    %224 = arith.addf %222, %223 : vector<4x16xf32>
    %225 = vector.extract_strided_slice %214 {offsets = [0, 32], sizes = [4, 16], strides = [1, 1]} : vector<4x64xf32> to vector<4x16xf32>
    %226 = vector.extract_strided_slice %214 {offsets = [0, 48], sizes = [4, 16], strides = [1, 1]} : vector<4x64xf32> to vector<4x16xf32>
    %cst_91 = arith.constant 5.000000e-01 : f32
    %227 = vector.broadcast %cst_91 : f32 to vector<4x16xf32>
    %228 = arith.mulf %227, %226 : vector<4x16xf32>
    %cst_92 = arith.constant 5.000000e-01 : f32
    %229 = vector.broadcast %cst_92 : f32 to vector<4x16xf32>
    %230 = arith.addf %228, %229 : vector<4x16xf32>
    %231 = arith.mulf %224, %205 : vector<4x16xf32>
    %232 = arith.mulf %219, %225 : vector<4x16xf32>
    %233 = arith.addf %231, %232 : vector<4x16xf32>
    %234 = math.tanh %233 : vector<4x16xf32>
    %235 = arith.mulf %230, %234 : vector<4x16xf32>
    %c0_93 = arith.constant 0 : index
    %c7 = arith.constant 7 : index
    %c0_94 = arith.constant 0 : index
    %c0_95 = arith.constant 0 : index
    %236 = vector.load %arg6[%c0_93, %c7, %c0_94, %c0_95] : memref<1x8x4x16xf32, #tpu.memory_space<vmem>>, vector<1x1x4x16xf32>
    %237 = vector.shape_cast %236 : vector<1x1x4x16xf32> to vector<4x16xf32>
    %238 = vector.shape_cast %235 : vector<4x16xf32> to vector<1x1x4x16xf32>
    tpu.vector_store %arg6[%c0_93, %c7, %c0_94, %c0_95], %238 {strides = array<i32>} : memref<1x8x4x16xf32, #tpu.memory_space<vmem>>, vector<1x1x4x16xf32>,
    %c0_96 = arith.constant 0 : index
    %c0_97 = arith.constant 0 : index
    %239 = vector.load %arg7[%c0_96, %c0_97] : memref<4x16xf32, #tpu.memory_space<vmem>>, vector<4x16xf32>
    tpu.vector_store %arg7[%c0_96, %c0_97], %235 {strides = array<i32>} : memref<4x16xf32, #tpu.memory_space<vmem>>, vector<4x16xf32>,
    %c0_98 = arith.constant 0 : index
    %c0_99 = arith.constant 0 : index
    %240 = vector.load %arg8[%c0_98, %c0_99] : memref<4x16xf32, #tpu.memory_space<vmem>>, vector<4x16xf32>
    tpu.vector_store %arg8[%c0_98, %c0_99], %233 {strides = array<i32>} : memref<4x16xf32, #tpu.memory_space<vmem>>, vector<4x16xf32>,
    return
  }
  func.func @transform_0(%arg0: i32, %arg1: i32) -> (i32, i32) {
    %c0_i32 = arith.constant 0 : i32
    %c0_i32_0 = arith.constant 0 : i32
    return %arg1, %c0_i32 : i32, i32
  }
  func.func @transform_1(%arg0: i32, %arg1: i32) -> (i32, i32, i32) {
    %c0_i32 = arith.constant 0 : i32
    %c0_i32_0 = arith.constant 0 : i32
    %c0_i32_1 = arith.constant 0 : i32
    return %arg0, %c0_i32, %c0_i32_0 : i32, i32, i32
  }
  func.func @transform_2(%arg0: i32, %arg1: i32) -> (i32, i32, i32) {
    %c0_i32 = arith.constant 0 : i32
    %c0_i32_0 = arith.constant 0 : i32
    %c0_i32_1 = arith.constant 0 : i32
    return %arg0, %c0_i32, %c0_i32_0 : i32, i32, i32
  }
  func.func @transform_3(%arg0: i32, %arg1: i32) -> (i32, i32, i32) {
    %c0_i32 = arith.constant 0 : i32
    %c0_i32_0 = arith.constant 0 : i32
    %c0_i32_1 = arith.constant 0 : i32
    return %arg0, %c0_i32, %c0_i32_0 : i32, i32, i32
  }
  func.func @transform_4(%arg0: i32, %arg1: i32) -> (i32, i32, i32, i32) {
    %c0_i32 = arith.constant 0 : i32
    %c0_i32_0 = arith.constant 0 : i32
    %c0_i32_1 = arith.constant 0 : i32
    return %arg0, %arg1, %c0_i32, %c0_i32_0 : i32, i32, i32, i32
  }
}

</mosaic_0001>

<llo_original>
// kernel: tpu_custom_call.1
$region0: #{tpu_custom_call.1}
  #allocation0 [shape = 'u32[]', space=smem, size = 0x4, offset = 0x4, fixed_abs, tag = 'smem constant byte address 0x4 - core index']
  #allocation1 [shape = 'u32[144,128]{1,0:T(1,128)}', space=vmem, size = 0x12000, scoped, tag = 'internal scratch']
  #allocation2 [shape = 'f32[4,16]{1,0:T(4,128)}', space=vmem, size = 0x800, scoped, tag = 'scratch operand']
  #allocation3 [shape = 'f32[4,16]{1,0:T(4,128)}', space=vmem, size = 0x800, scoped, tag = 'scratch operand']
  %s0 = inlined_call_operand.vmem [shape: f32[32,16], index: 0, kind: input, shape index: {}]
  %s1 = inlined_call_operand.vmem [shape: f32[2,16,64], index: 1, kind: input, shape index: {}]
  %s2 = inlined_call_operand.hbm [shape: f32[2,16,64], index: 2, kind: input, shape index: {}]
  %s3 = inlined_call_operand.vmem [shape: f32[2,1,64], index: 3, kind: input, shape index: {}]
  %s4 = inlined_call_operand.hbm [shape: f32[2,8,4,16], index: 4, kind: output, shape index: {}]
  %s5 = sld [smem:[#allocation0]]
  $region57: #{tpu_custom_call.1} parent=0
    _
  %s7 = ssub.s32 1, %s5
  %s8 = scalar_select 0, %s7, %s5
  $region1: #{tpu_custom_call.1} parent=0
    #allocation4 [shape = 'u8[16384]{0}', space=vmem, size = 0x4000, scoped, tag = 'input window, operand 2']
    #allocation5 [shape = 's32[2]{0}', space=sflag, size = 0x8, scoped, tag = 'scoped memory for tpu_custom_call.1']
    #allocation6 [shape = 's32[2]{0}', space=sflag, size = 0x8, scoped, tag = 'scoped memory for tpu_custom_call.1']
    #allocation7 [shape = 'u8[32768]{0}', space=vmem, size = 0x8000, scoped, tag = 'output window, operand 0']
    %9 = vsyncpa [#allocation5], 0
    %s10 = scalar_lea.sflag [#allocation5], 1
    %11 = vsyncpa %s10, 0
    %12 = vsyncpa [#allocation6], 0
    %s13 = scalar_lea.sflag [#allocation6], 1
    %14 = vsyncpa %s13, 0
    loop: start=0, step=1, limit=4
    $region2: #{tpu_custom_call.1} parent=1 // loop_pre_header
      _
    $region3: #{tpu_custom_call.1} parent=1 // loop_header
      %s16 = sphi 0, %s20
      %p17 = scmp.ge.s32.totalorder %s16, 4
      %s23 = sphi 0, %s35
      %s24 = sphi 0, %s31
      %s25 = sphi 0, %s23
      %s26 = sphi 0, %s24
      %s27 = sphi 0, %s25
      %s28 = sphi 0, %s26
      %s38 = sphi 0, %s40
      %s41 = sphi 0, %s38
      %s42 = sphi 0, %s41
      %s58 = sphi 0, %s42
      %s64 = sphi 0, %s66
      %s67 = sphi 0, %s64
      %s68 = sphi 0, %s67
      %s84 = sphi 0, %s68
      %s90 = sphi 0, %s92
      %s93 = sphi 0, %s90
      %s94 = sphi 0, %s93
      %s110 = sphi 0, %s94
      %s116 = sphi 0, %s118
      %s119 = sphi 0, %s116
      %s120 = sphi 0, %s119
      %s136 = sphi 0, %s120
      %s144 = sphi 0, %s146
      %s147 = sphi 0, %s144
      %s148 = sphi 0, %s147
      %s164 = sphi 0, %s148
    $region4: #{tpu_custom_call.1} parent=1 // loop_header_branch
      %19 = sbr.rel (%p17) target = $region8
    $region5: #{tpu_custom_call.1} parent=1 // loop_body
      %s21 = ssub.s32 %s16, 1
      %s22 = ssub.s32 %s16, 2
      %s29 = sadd.s32 1, %s24
      %p30 = scmp.ge.s32.totalorder %s29, 1
      %s31 = scalar_select %p30, 0, %s29
      %s32 = sadd.s32 1, %s23
      %s33 = scalar_select %p30, %s32, %s23
      %p34 = scmp.ge.s32.totalorder %s33, 2
      %s35 = scalar_select %p34, 0, %s33
      %s36 = ssub.s32 %s24, %s31
      %p37 = scmp.eq.s32.totalorder %s36, 0
      %s39 = sadd.s32 %s38, 1
      %s40 = scalar_select %p37, %s38, %s39
      %p43 = pneg %p37
      %p44 = scmp.eq.s32.totalorder %s16, 1
      %p45 = por %p43, %p44
      %p46 = scmp.ne.s32.totalorder %s38, %s41
      %p47 = scmp.eq.s32.totalorder %s16, 0
      %p48 = por %p46, %p47
      %p49 = scmp.ne.s32.totalorder %s38, %s41
      %p50 = scmp.eq.s32.totalorder %s21, 1
      %p51 = por %p49, %p50
      %p52 = scmp.ne.s32.totalorder %s41, %s42
      %p53 = scmp.eq.s32.totalorder %s21, 0
      %p54 = por %p52, %p53
      %p55 = scmp.ne.s32.totalorder %s41, %s42
      %p56 = scmp.eq.s32.totalorder %s22, 1
      %p57 = por %p55, %p56
      %p59 = scmp.ne.s32.totalorder %s42, %s58
      %p60 = scmp.eq.s32.totalorder %s22, 0
      %p61 = por %p59, %p60
      %s62 = ssub.s32 %s23, %s35
      %p63 = scmp.eq.s32.totalorder %s62, 0
      %s65 = sadd.s32 %s64, 1
      %s66 = scalar_select %p63, %s64, %s65
      %p69 = pneg %p63
      %p70 = scmp.eq.s32.totalorder %s16, 1
      %p71 = por %p69, %p70
      %p72 = scmp.ne.s32.totalorder %s64, %s67
      %p73 = scmp.eq.s32.totalorder %s16, 0
      %p74 = por %p72, %p73
      %p75 = scmp.ne.s32.totalorder %s64, %s67
      %p76 = scmp.eq.s32.totalorder %s21, 1
      %p77 = por %p75, %p76
      %p78 = scmp.ne.s32.totalorder %s67, %s68
      %p79 = scmp.eq.s32.totalorder %s21, 0
      %p80 = por %p78, %p79
      %p81 = scmp.ne.s32.totalorder %s67, %s68
      %p82 = scmp.eq.s32.totalorder %s22, 1
      %p83 = por %p81, %p82
      %p85 = scmp.ne.s32.totalorder %s68, %s84
      %p86 = scmp.eq.s32.totalorder %s22, 0
      %p87 = por %p85, %p86
      %s88 = ssub.s32 %s23, %s35
      %p89 = scmp.eq.s32.totalorder %s88, 0
      %s91 = sadd.s32 %s90, 1
      %s92 = scalar_select %p89, %s90, %s91
      %p95 = pneg %p89
      %p96 = scmp.eq.s32.totalorder %s16, 1
      %p97 = por %p95, %p96
      %p98 = scmp.ne.s32.totalorder %s90, %s93
      %p99 = scmp.eq.s32.totalorder %s16, 0
      %p100 = por %p98, %p99
      %p101 = scmp.ne.s32.totalorder %s90, %s93
      %p102 = scmp.eq.s32.totalorder %s21, 1
      %p103 = por %p101, %p102
      %p104 = scmp.ne.s32.totalorder %s93, %s94
      %p105 = scmp.eq.s32.totalorder %s21, 0
      %p106 = por %p104, %p105
      %p107 = scmp.ne.s32.totalorder %s93, %s94
      %p108 = scmp.eq.s32.totalorder %s22, 1
      %p109 = por %p107, %p108
      %p111 = scmp.ne.s32.totalorder %s94, %s110
      %p112 = scmp.eq.s32.totalorder %s22, 0
      %p113 = por %p111, %p112
      %s114 = ssub.s32 %s23, %s35
      %p115 = scmp.eq.s32.totalorder %s114, 0
      %s117 = sadd.s32 %s116, 1
      %s118 = scalar_select %p115, %s116, %s117
      %p121 = pneg %p115
      %p122 = scmp.eq.s32.totalorder %s16, 1
      %p123 = por %p121, %p122
      %p124 = scmp.ne.s32.totalorder %s116, %s119
      %p125 = scmp.eq.s32.totalorder %s16, 0
      %p126 = por %p124, %p125
      %p127 = scmp.ne.s32.totalorder %s116, %s119
      %p128 = scmp.eq.s32.totalorder %s21, 1
      %p129 = por %p127, %p128
      %p130 = scmp.ne.s32.totalorder %s119, %s120
      %p131 = scmp.eq.s32.totalorder %s21, 0
      %p132 = por %p130, %p131
      %p133 = scmp.ne.s32.totalorder %s119, %s120
      %p134 = scmp.eq.s32.totalorder %s22, 1
      %p135 = por %p133, %p134
      %p137 = scmp.ne.s32.totalorder %s120, %s136
      %p138 = scmp.eq.s32.totalorder %s22, 0
      %p139 = por %p137, %p138
      %s140 = ssub.s32 %s23, %s35
      %s141 = ssub.s32 %s24, %s31
      %s142 = sor.u32 %s140, %s141
      %p143 = scmp.eq.s32.totalorder %s142, 0
      %s145 = sadd.s32 %s144, 1
      %s146 = scalar_select %p143, %s144, %s145
      %p149 = pneg %p143
      %p150 = scmp.eq.s32.totalorder %s16, 1
      %p151 = por %p149, %p150
      %p152 = scmp.ne.s32.totalorder %s144, %s147
      %p153 = scmp.eq.s32.totalorder %s16, 0
      %p154 = por %p152, %p153
      %p155 = scmp.ne.s32.totalorder %s144, %s147
      %p156 = scmp.eq.s32.totalorder %s21, 1
      %p157 = por %p155, %p156
      %p158 = scmp.ne.s32.totalorder %s147, %s148
      %p159 = scmp.eq.s32.totalorder %s21, 0
      %p160 = por %p158, %p159
      %p161 = scmp.ne.s32.totalorder %s147, %s148
      %p162 = scmp.eq.s32.totalorder %s22, 1
      %p163 = por %p161, %p162
      %p165 = scmp.ne.s32.totalorder %s148, %s164
      %p166 = scmp.eq.s32.totalorder %s22, 0
      %p167 = por %p165, %p166
      %p168 = scmp.le.s32.totalorder 1, %s16
      %p169 = scmp.lt.s32.totalorder %s16, 3
      %p170 = pnand %p168, %p169
      %p171 = pneg %p170
      // Predicated region
      $region9: #{tpu_custom_call.1} parent=5 // pred_check
        _
      $region10: #{tpu_custom_call.1} parent=5 // pred_check_branch
        %173 = sbr.rel (%p170) target = $region12
      $region11: #{tpu_custom_call.1} parent=5 // pred_region
        %s174 = ssub.s32 %s16, 1
        // Predicated region
        $region13: #{tpu_custom_call.1} parent=11 // pred_check
          %p175 = pneg %p54
        $region14: #{tpu_custom_call.1} parent=11 // pred_check_branch
          %177 = sbr.rel (%p175) target = $region16
        $region15: #{tpu_custom_call.1} parent=11 // pred_region
          %s178 = smul.u32 4, %s26
          %p179 = scmp.lt.s32.totalorder %s178, 3
          %s180 = scalar_select %p179, %s178, 3
          %s181 = smul.addr %s180, 8
          %s182 = scalar_lea.vmem %s0, %s181
          %s183 = smul.u32 4, %s26
        $region16: #{tpu_custom_call.1} parent=11 // pred_fallthru
          _
      $region12: #{tpu_custom_call.1} parent=5 // pred_fallthru
        _
      %p184 = scmp.lt.s32.totalorder %s16, 2
      // Predicated region
      $region17: #{tpu_custom_call.1} parent=5 // pred_check
        %p185 = pneg %p184
      $region18: #{tpu_custom_call.1} parent=5 // pred_check_branch
        %187 = sbr.rel (%p185) target = $region20
      $region19: #{tpu_custom_call.1} parent=5 // pred_region
        // Predicated region
        $region21: #{tpu_custom_call.1} parent=19 // pred_check
          %p188 = pneg %p74
        $region22: #{tpu_custom_call.1} parent=19 // pred_check_branch
          %190 = sbr.rel (%p188) target = $region24
        $region23: #{tpu_custom_call.1} parent=19 // pred_region
          %p191 = scmp.lt.s32.totalorder %s23, 1
          %s192 = scalar_select %p191, %s23, 1
          %s193 = smul.addr %s192, 2
          %s194 = smul.addr %s193, 8
          %s195 = scalar_lea.vmem %s1, %s194
        $region24: #{tpu_custom_call.1} parent=19 // pred_fallthru
          _
        // Predicated region
        $region25: #{tpu_custom_call.1} parent=19 // pred_check
          %p196 = pneg %p100
        $region26: #{tpu_custom_call.1} parent=19 // pred_check_branch
          %198 = sbr.rel (%p196) target = $region28
        $region27: #{tpu_custom_call.1} parent=19 // pred_region
          %s199 = sand.u32 %s90, 1
          %s200 = scalar_lea.sflag [#allocation5], %s199
          %s201 = sand.u32 %s90, 1
          %s202 = smul.addr %s201, 16
          %s203 = scalar_lea.vmem [#allocation4], %s202
          %s205 = ssub.s32 256, 256
          %206 = vsyncadd %s200, %s205
          %s207 = smul.addr %s23, 2
          %s208 = smul.addr %s207, 128
          %s209 = scalar_lea.hbm %s2, %s208
          %s210 = sshll.u32 %s203, 4
          %s211 = int_to_ptr.vmem [resolvable:$true] %s210
          %216 = dma.hbm_to_vmem [thread:$0]  %s209, 256, %s211, %s200, 128, 128, 8
        $region28: #{tpu_custom_call.1} parent=19 // pred_fallthru
          _
        // Predicated region
        $region29: #{tpu_custom_call.1} parent=19 // pred_check
          %p217 = pneg %p126
        $region30: #{tpu_custom_call.1} parent=19 // pred_check_branch
          %219 = sbr.rel (%p217) target = $region32
        $region31: #{tpu_custom_call.1} parent=19 // pred_region
          %p220 = scmp.lt.s32.totalorder %s23, 1
          %s221 = scalar_select %p220, %s23, 1
          %s222 = scalar_lea.vmem %s3, %s221
        $region32: #{tpu_custom_call.1} parent=19 // pred_fallthru
          _
      $region20: #{tpu_custom_call.1} parent=5 // pred_fallthru
        _
      %p223 = scmp.le.s32.totalorder 1, %s16
      %p224 = scmp.lt.s32.totalorder %s16, 3
      %p225 = pnand %p223, %p224
      %p226 = pneg %p225
      // Predicated region
      $region33: #{tpu_custom_call.1} parent=5 // pred_check
        _
      $region34: #{tpu_custom_call.1} parent=5 // pred_check_branch
        %228 = sbr.rel (%p225) target = $region36
      $region35: #{tpu_custom_call.1} parent=5 // pred_region
        %s229 = ssub.s32 %s16, 1
        %s230 = sand.u32 %s93, 1
        %s231 = scalar_lea.sflag [#allocation5], %s230
        %s232 = sand.u32 %s93, 1
        %s233 = smul.addr %s232, 16
        %s234 = scalar_lea.vmem [#allocation4], %s233
        // Predicated region
        $region37: #{tpu_custom_call.1} parent=35 // pred_check
          %p235 = pneg %p106
        $region38: #{tpu_custom_call.1} parent=35 // pred_check_branch
          %237 = sbr.rel (%p235) target = $region40
        $region39: #{tpu_custom_call.1} parent=35 // pred_region
          %238 = dma.done %s231, 256
        $region40: #{tpu_custom_call.1} parent=35 // pred_fallthru
          _
        %s239 = smul.u32 4, %s26
        %p240 = scmp.lt.s32.totalorder %s239, 3
        %s241 = scalar_select %p240, %s239, 3
        %s242 = smul.addr %s241, 8
        %s243 = scalar_lea.vmem %s0, %s242
        %p244 = pneg %p54
        %p245 = pneg %p51
        %p246 = scmp.lt.s32.totalorder %s25, 1
        %s247 = scalar_select %p246, %s25, 1
        %s248 = smul.addr %s247, 2
        %s249 = smul.addr %s248, 8
        %s250 = scalar_lea.vmem %s1, %s249
        %p251 = pneg %p80
        %p252 = pneg %p77
        %s253 = sand.u32 %s93, 1
        %s254 = scalar_lea.sflag [#allocation5], %s253
        %s255 = sand.u32 %s93, 1
        %s256 = smul.addr %s255, 16
        %s257 = scalar_lea.vmem [#allocation4], %s256
        %p258 = pneg %p106
        %p259 = pneg %p103
        %p260 = scmp.lt.s32.totalorder %s25, 1
        %s261 = scalar_select %p260, %s25, 1
        %s262 = scalar_lea.vmem %s3, %s261
        %p263 = pneg %p132
        %p264 = pneg %p129
        %p265 = pneg %p160
        %p266 = pneg %p157
        %s267 = sand.u32 %s147, 1
        %s268 = scalar_lea.sflag [#allocation6], %s267
        %s269 = sand.u32 %s147, 1
        %s270 = smul.addr %s269, 32
        %s271 = scalar_lea.vmem [#allocation7], %s270
        %s272 = smul.u32 4, %s26
        %p273 = scmp.lt.s32.totalorder %s272, 3
        %s274 = scalar_select %p273, %s272, 3
        %s275 = smul.addr %s274, 8
        %s276 = scalar_lea.vmem %s0, %s275
        %s277 = smul.u32 4, %s26
        %p278 = scmp.lt.s32.totalorder %s25, 1
        %s279 = scalar_select %p278, %s25, 1
        %s280 = smul.addr %s279, 2
        %s281 = smul.addr %s280, 8
        %s282 = scalar_lea.vmem %s1, %s281
        %p283 = scmp.lt.s32.totalorder %s25, 1
        %s284 = scalar_select %p283, %s25, 1
        %s285 = scalar_lea.vmem %s3, %s284
        %s286 = smul.u32 8, %s26
        %p287 = scmp.eq.s32.totalorder %s26, 0
        // Predicated region
        $region41: #{tpu_custom_call.1} parent=35 // pred_check
          %p288 = pneg %p287
        $region42: #{tpu_custom_call.1} parent=35 // pred_check_branch
          %290 = sbr.rel (%p288) target = $region44
        $region43: #{tpu_custom_call.1} parent=35 // pred_region
          %vm291 = vcmask 125952
          %292 = vst.msk [vmem:[#allocation2] sm:$0xf] %vm291, 0.0
          %293 = vst.msk [vmem:[#allocation3] sm:$0xf] %vm291, 0.0
        $region44: #{tpu_custom_call.1} parent=35 // pred_fallthru
          _
        %v294 = vld [vmem:[%s276] sm:$0xff]
        %v295 = vld [vmem:[%s276 + $0x8] sm:$0xff]
        %v296 = vld [vmem:[%s276 + $0x10] sm:$0xff]
        %v297 = vld [vmem:[%s276 + $0x18] sm:$0xff]
        %v298 = vld [vmem:[%s282] sm:$0xff]
        %v299 = vld [vmem:[%s282 + $0x8] sm:$0xff]
        %v300 = vld [vmem:[%s285] sm:$0x1]
        %v302 = vlaneseq
        %v303 = vshrl.u32 %v302, 7
        %v304 = vsub.s32 0, %v303
        %v305 = vrot.slane %v300, %v304
        %vm307 = vcmask 130048
        %v309 = vsel %vm307, %v294, 0
        %v312 = vsel %vm307, %v295, 0
        %v315 = vsel %vm307, %v296, 0
        %v318 = vsel %vm307, %v297, 0
        %320 = vmatprep.subr.mxu0 0.0
        %321 = vmatpush1.msra.mxu0 %v298
        %322 = vmatprep.subr.mxu0 0.0
        %323 = vmatpush1.msra.mxu0 %v299
        %324 = vmatprep.subr.mxu0 0.0
        %325 = vmatpush1.msra.mxu0 0.0
        %326 = vmatprep.subr.mxu0 0.0
        %327 = vmatpush1.msra.mxu0 0.0
        %328 = vmatprep.subr.mxu0 0.0
        %329 = vmatpush1.msra.mxu0 0.0
        %330 = vmatprep.subr.mxu0 0.0
        %331 = vmatpush1.msra.mxu0 0.0
        %332 = vmatprep.subr.mxu0 0.0
        %333 = vmatpush1.msra.mxu0 0.0
        %334 = vmatprep.subr.mxu0 0.0
        %335 = vmatpush1.msra.mxu0 0.0
        %336 = vmatprep.subr.mxu0 0.0
        %337 = vmatpush1.msra.mxu0 0.0
        %338 = vmatprep.subr.mxu0 0.0
        %339 = vmatpush1.msra.mxu0 0.0
        %340 = vmatprep.subr.mxu0 0.0
        %341 = vmatpush1.msra.mxu0 0.0
        %342 = vmatprep.subr.mxu0 0.0
        %343 = vmatpush1.msra.mxu0 0.0
        %344 = vmatprep.subr.mxu0 0.0
        %345 = vmatpush1.msra.mxu0 0.0
        %346 = vmatprep.subr.mxu0 0.0
        %347 = vmatpush1.msra.mxu0 0.0
        %348 = vmatprep.subr.mxu0 0.0
        %349 = vmatpush1.msra.mxu0 0.0
        %350 = vmatprep.subr.mxu0 0.0
        %351 = vmatpush1.msra.mxu0 0.0
        %352 = vmatprep.subr.mxu0 0.0
        %353 = vmatpush1.msra.mxu0 0.0
        %354 = vmatprep.subr.mxu0 0.0
        %355 = vmatpush1.msra.mxu0 0.0
        %356 = vmatprep.subr.mxu0 0.0
        %357 = vmatpush1.msra.mxu0 0.0
        %358 = vmatprep.subr.mxu0 0.0
        %359 = vmatpush1.msra.mxu0 0.0
        %360 = vmatprep.subr.mxu0 0.0
        %361 = vmatpush1.msra.mxu0 0.0
        %362 = vmatprep.subr.mxu0 0.0
        %363 = vmatpush1.msra.mxu0 0.0
        %364 = vmatprep.subr.mxu0 0.0
        %365 = vmatpush1.msra.mxu0 0.0
        %366 = vmatprep.subr.mxu0 0.0
        %367 = vmatpush1.msra.mxu0 0.0
        %368 = vmatprep.subr.mxu0 0.0
        %369 = vmatpush1.msra.mxu0 0.0
        %370 = vmatprep.subr.mxu0 0.0
        %371 = vmatpush1.msra.mxu0 0.0
        %372 = vmatprep.subr.mxu0 0.0
        %373 = vmatpush1.msra.mxu0 0.0
        %374 = vmatprep.subr.mxu0 0.0
        %375 = vmatpush1.msra.mxu0 0.0
        %376 = vmatprep.subr.mxu0 0.0
        %377 = vmatpush1.msra.mxu0 0.0
        %378 = vmatprep.subr.mxu0 0.0
        %379 = vmatpush1.msra.mxu0 0.0
        %380 = vmatprep.subr.mxu0 0.0
        %381 = vmatpush1.msra.mxu0 0.0
        %382 = vmatprep.subr.mxu0 0.0
        %383 = vmatpush1.msra.mxu0 0.0
        %384 = vmatprep.mubr.f32.mxu0 0.0
        %385 = vmatmul.mubr.f32.gmra.mrb[0].mxu0 %v309
        %v386 = vpop.f32.mrb[0].mxu0
        %v387 = vadd.f32 %v305, %v386
        %v388 = vpop.f32.mrb[0].mxu0
        %389 = vmatprep.mubr.f32.mxu0 0.0
        %390 = vmatmul.mubr.f32.gmra.mrb[0].mxu0 %v312
        %v391 = vpop.f32.mrb[0].mxu0
        %v392 = vadd.f32 %v305, %v391
        %v393 = vpop.f32.mrb[0].mxu0
        %394 = vmatprep.mubr.f32.mxu0 0.0
        %395 = vmatmul.mubr.f32.gmra.mrb[0].mxu0 %v315
        %v396 = vpop.f32.mrb[0].mxu0
        %v397 = vadd.f32 %v305, %v396
        %v398 = vpop.f32.mrb[0].mxu0
        %399 = vmatprep.mubr.f32.mxu0 0.0
        %400 = vmatmul.mubr.f32.gmra.mrb[0].mxu0 %v318
        %v401 = vpop.f32.mrb[0].mxu0
        %v402 = vadd.f32 %v305, %v401
        %v403 = vpop.f32.mrb[0].mxu0
        %404 = vdwg.mxu0
        %v405 = vld [vmem:[%s234] sm:$0xff]
        %v406 = vld [vmem:[%s234 + $0x8] sm:$0xff]
        %v407 = vld [vmem:[#allocation2] sm:$0xf]
        %v408 = vld [vmem:[#allocation3] sm:$0xf]
        %v410 = vsel %vm307, %v407, 0
        %412 = vmatprep.subr.mxu0 0.0
        %413 = vmatpush1.msra.mxu0 %v405
        %414 = vmatprep.subr.mxu0 0.0
        %415 = vmatpush1.msra.mxu0 %v406
        %416 = vmatprep.subr.mxu0 0.0
        %417 = vmatpush1.msra.mxu0 0.0
        %418 = vmatprep.subr.mxu0 0.0
        %419 = vmatpush1.msra.mxu0 0.0
        %420 = vmatprep.subr.mxu0 0.0
        %421 = vmatpush1.msra.mxu0 0.0
        %422 = vmatprep.subr.mxu0 0.0
        %423 = vmatpush1.msra.mxu0 0.0
        %424 = vmatprep.subr.mxu0 0.0
        %425 = vmatpush1.msra.mxu0 0.0
        %426 = vmatprep.subr.mxu0 0.0
        %427 = vmatpush1.msra.mxu0 0.0
        %428 = vmatprep.subr.mxu0 0.0
        %429 = vmatpush1.msra.mxu0 0.0
        %430 = vmatprep.subr.mxu0 0.0
        %431 = vmatpush1.msra.mxu0 0.0
        %432 = vmatprep.subr.mxu0 0.0
        %433 = vmatpush1.msra.mxu0 0.0
        %434 = vmatprep.subr.mxu0 0.0
        %435 = vmatpush1.msra.mxu0 0.0
        %436 = vmatprep.subr.mxu0 0.0
        %437 = vmatpush1.msra.mxu0 0.0
        %438 = vmatprep.subr.mxu0 0.0
        %439 = vmatpush1.msra.mxu0 0.0
        %440 = vmatprep.subr.mxu0 0.0
        %441 = vmatpush1.msra.mxu0 0.0
        %442 = vmatprep.subr.mxu0 0.0
        %443 = vmatpush1.msra.mxu0 0.0
        %444 = vmatprep.subr.mxu0 0.0
        %445 = vmatpush1.msra.mxu0 0.0
        %446 = vmatprep.subr.mxu0 0.0
        %447 = vmatpush1.msra.mxu0 0.0
        %448 = vmatprep.subr.mxu0 0.0
        %449 = vmatpush1.msra.mxu0 0.0
        %450 = vmatprep.subr.mxu0 0.0
        %451 = vmatpush1.msra.mxu0 0.0
        %452 = vmatprep.subr.mxu0 0.0
        %453 = vmatpush1.msra.mxu0 0.0
        %454 = vmatprep.subr.mxu0 0.0
        %455 = vmatpush1.msra.mxu0 0.0
        %456 = vmatprep.subr.mxu0 0.0
        %457 = vmatpush1.msra.mxu0 0.0
        %458 = vmatprep.subr.mxu0 0.0
        %459 = vmatpush1.msra.mxu0 0.0
        %460 = vmatprep.subr.mxu0 0.0
        %461 = vmatpush1.msra.mxu0 0.0
        %462 = vmatprep.subr.mxu0 0.0
        %463 = vmatpush1.msra.mxu0 0.0
        %464 = vmatprep.subr.mxu0 0.0
        %465 = vmatpush1.msra.mxu0 0.0
        %466 = vmatprep.subr.mxu0 0.0
        %467 = vmatpush1.msra.mxu0 0.0
        %468 = vmatprep.subr.mxu0 0.0
        %469 = vmatpush1.msra.mxu0 0.0
        %470 = vmatprep.subr.mxu0 0.0
        %471 = vmatpush1.msra.mxu0 0.0
        %472 = vmatprep.subr.mxu0 0.0
        %473 = vmatpush1.msra.mxu0 0.0
        %474 = vmatprep.subr.mxu0 0.0
        %475 = vmatpush1.msra.mxu0 0.0
        %476 = vmatprep.mubr.f32.mxu0 0.0
        %477 = vmatmul.mubr.f32.gmra.mrb[0].mxu0 %v410
        %v478 = vpop.f32.mrb[0].mxu0
        %v479 = vadd.f32 0.0, %v478
        %v480 = vpop.f32.mrb[0].mxu0
        %481 = vdwg.mxu0
        %v482 = vadd.f32 %v387, %v479
        %v483 = vtanh.pop %v482
        %v484 = vmul.f32 %v483, 0.5
        %v485 = vadd.f32 %v484, 0.5
        %487 = vrot.lane.b32.xlu0 %v408, 16
        %v488 = vpop.permute.xlu0 %487
        %v490 = vmul.f32 %v485, %v488
        %492 = vrot.lane.b32.xlu0 %v483, 96
        %v493 = vpop.permute.xlu0 %492
        %v495 = vmul.f32 %v485, %v493
        %497 = vrot.lane.b32.xlu0 %v495, 16
        %v498 = vpop.permute.xlu0 %497
        %v500 = vadd.f32 %v490, %v498
        %v501 = vtanh.pop %v500
        %503 = vrot.lane.b32.xlu0 %v501, 32
        %v504 = vpop.permute.xlu0 %503
        %v506 = vmul.f32 %v485, %v504
        %508 = vrot.lane.b32.xlu0 %v506, 80
        %v509 = vpop.permute.xlu0 %508
        %vm511 = vcmask 125952
        %512 = vst.msk [vmem:[%s271] sm:$0xf] %vm511, %v509
        %v513 = vsel %vm307, %v509, 0
        %515 = vmatprep.subr.mxu0 0.0
        %516 = vmatpush1.msra.mxu0 %v405
        %517 = vmatprep.subr.mxu0 0.0
        %518 = vmatpush1.msra.mxu0 %v406
        %519 = vmatprep.subr.mxu0 0.0
        %520 = vmatpush1.msra.mxu0 0.0
        %521 = vmatprep.subr.mxu0 0.0
        %522 = vmatpush1.msra.mxu0 0.0
        %523 = vmatprep.subr.mxu0 0.0
        %524 = vmatpush1.msra.mxu0 0.0
        %525 = vmatprep.subr.mxu0 0.0
        %526 = vmatpush1.msra.mxu0 0.0
        %527 = vmatprep.subr.mxu0 0.0
        %528 = vmatpush1.msra.mxu0 0.0
        %529 = vmatprep.subr.mxu0 0.0
        %530 = vmatpush1.msra.mxu0 0.0
        %531 = vmatprep.subr.mxu0 0.0
        %532 = vmatpush1.msra.mxu0 0.0
        %533 = vmatprep.subr.mxu0 0.0
        %534 = vmatpush1.msra.mxu0 0.0
        %535 = vmatprep.subr.mxu0 0.0
        %536 = vmatpush1.msra.mxu0 0.0
        %537 = vmatprep.subr.mxu0 0.0
        %538 = vmatpush1.msra.mxu0 0.0
        %539 = vmatprep.subr.mxu0 0.0
        %540 = vmatpush1.msra.mxu0 0.0
        %541 = vmatprep.subr.mxu0 0.0
        %542 = vmatpush1.msra.mxu0 0.0
        %543 = vmatprep.subr.mxu0 0.0
        %544 = vmatpush1.msra.mxu0 0.0
        %545 = vmatprep.subr.mxu0 0.0
        %546 = vmatpush1.msra.mxu0 0.0
        %547 = vmatprep.subr.mxu0 0.0
        %548 = vmatpush1.msra.mxu0 0.0
        %549 = vmatprep.subr.mxu0 0.0
        %550 = vmatpush1.msra.mxu0 0.0
        %551 = vmatprep.subr.mxu0 0.0
        %552 = vmatpush1.msra.mxu0 0.0
        %553 = vmatprep.subr.mxu0 0.0
        %554 = vmatpush1.msra.mxu0 0.0
        %555 = vmatprep.subr.mxu0 0.0
        %556 = vmatpush1.msra.mxu0 0.0
        %557 = vmatprep.subr.mxu0 0.0
        %558 = vmatpush1.msra.mxu0 0.0
        %559 = vmatprep.subr.mxu0 0.0
        %560 = vmatpush1.msra.mxu0 0.0
        %561 = vmatprep.subr.mxu0 0.0
        %562 = vmatpush1.msra.mxu0 0.0
        %563 = vmatprep.subr.mxu0 0.0
        %564 = vmatpush1.msra.mxu0 0.0
        %565 = vmatprep.subr.mxu0 0.0
        %566 = vmatpush1.msra.mxu0 0.0
        %567 = vmatprep.subr.mxu0 0.0
        %568 = vmatpush1.msra.mxu0 0.0
        %569 = vmatprep.subr.mxu0 0.0
        %570 = vmatpush1.msra.mxu0 0.0
        %571 = vmatprep.subr.mxu0 0.0
        %572 = vmatpush1.msra.mxu0 0.0
        %573 = vmatprep.subr.mxu0 0.0
        %574 = vmatpush1.msra.mxu0 0.0
        %575 = vmatprep.subr.mxu0 0.0
        %576 = vmatpush1.msra.mxu0 0.0
        %577 = vmatprep.subr.mxu0 0.0
        %578 = vmatpush1.msra.mxu0 0.0
        %579 = vmatprep.mubr.f32.mxu0 0.0
        %580 = vmatmul.mubr.f32.gmra.mrb[0].mxu0 %v513
        %v581 = vpop.f32.mrb[0].mxu0
        %v582 = vadd.f32 0.0, %v581
        %v583 = vpop.f32.mrb[0].mxu0
        %584 = vdwg.mxu0
        %v586 = vrot.slane %v582, 4
        %v588 = vadd.f32 %v387, %v586
        %v589 = vtanh.pop %v588
        %v590 = vmul.f32 %v589, 0.5
        %v591 = vadd.f32 %v590, 0.5
        %v593 = vrot.slane %v500, 4
        %v595 = vmul.f32 %v591, %v593
        %597 = vrot.lane.b32.xlu0 %v589, 96
        %v598 = vpop.permute.xlu0 %597
        %v600 = vmul.f32 %v591, %v598
        %602 = vrot.lane.b32.xlu0 %v600, 16
        %v603 = vpop.permute.xlu0 %602
        %v605 = vadd.f32 %v595, %v603
        %v606 = vtanh.pop %v605
        %608 = vrot.lane.b32.xlu0 %v606, 32
        %v609 = vpop.permute.xlu0 %608
        %v611 = vmul.f32 %v591, %v609
        %613 = vrot.lane.b32.xlu0 %v611, 80
        %v614 = vpop.permute.xlu0 %613
        %s616 = scalar_lea.vmem %s271, 4 [#allocation7]
        %vm617 = vcmask 130052
        %618 = vst.msk [vmem:[%s616 - $0x4] sm:$0xf0] %vm617, %v614
        %v619 = vrot.slane %v611, 4
        %620 = vrot.lane.b32.xlu0 %v619, 80
        %v621 = vpop.permute.xlu0 %620
        %v622 = vsel %vm307, %v621, 0
        %624 = vmatprep.subr.mxu0 0.0
        %625 = vmatpush1.msra.mxu0 %v405
        %626 = vmatprep.subr.mxu0 0.0
        %627 = vmatpush1.msra.mxu0 %v406
        %628 = vmatprep.subr.mxu0 0.0
        %629 = vmatpush1.msra.mxu0 0.0
        %630 = vmatprep.subr.mxu0 0.0
        %631 = vmatpush1.msra.mxu0 0.0
        %632 = vmatprep.subr.mxu0 0.0
        %633 = vmatpush1.msra.mxu0 0.0
        %634 = vmatprep.subr.mxu0 0.0
        %635 = vmatpush1.msra.mxu0 0.0
        %636 = vmatprep.subr.mxu0 0.0
        %637 = vmatpush1.msra.mxu0 0.0
        %638 = vmatprep.subr.mxu0 0.0
        %639 = vmatpush1.msra.mxu0 0.0
        %640 = vmatprep.subr.mxu0 0.0
        %641 = vmatpush1.msra.mxu0 0.0
        %642 = vmatprep.subr.mxu0 0.0
        %643 = vmatpush1.msra.mxu0 0.0
        %644 = vmatprep.subr.mxu0 0.0
        %645 = vmatpush1.msra.mxu0 0.0
        %646 = vmatprep.subr.mxu0 0.0
        %647 = vmatpush1.msra.mxu0 0.0
        %648 = vmatprep.subr.mxu0 0.0
        %649 = vmatpush1.msra.mxu0 0.0
        %650 = vmatprep.subr.mxu0 0.0
        %651 = vmatpush1.msra.mxu0 0.0
        %652 = vmatprep.subr.mxu0 0.0
        %653 = vmatpush1.msra.mxu0 0.0
        %654 = vmatprep.subr.mxu0 0.0
        %655 = vmatpush1.msra.mxu0 0.0
        %656 = vmatprep.subr.mxu0 0.0
        %657 = vmatpush1.msra.mxu0 0.0
        %658 = vmatprep.subr.mxu0 0.0
        %659 = vmatpush1.msra.mxu0 0.0
        %660 = vmatprep.subr.mxu0 0.0
        %661 = vmatpush1.msra.mxu0 0.0
        %662 = vmatprep.subr.mxu0 0.0
        %663 = vmatpush1.msra.mxu0 0.0
        %664 = vmatprep.subr.mxu0 0.0
        %665 = vmatpush1.msra.mxu0 0.0
        %666 = vmatprep.subr.mxu0 0.0
        %667 = vmatpush1.msra.mxu0 0.0
        %668 = vmatprep.subr.mxu0 0.0
        %669 = vmatpush1.msra.mxu0 0.0
        %670 = vmatprep.subr.mxu0 0.0
        %671 = vmatpush1.msra.mxu0 0.0
        %672 = vmatprep.subr.mxu0 0.0
        %673 = vmatpush1.msra.mxu0 0.0
        %674 = vmatprep.subr.mxu0 0.0
        %675 = vmatpush1.msra.mxu0 0.0
        %676 = vmatprep.subr.mxu0 0.0
        %677 = vmatpush1.msra.mxu0 0.0
        %678 = vmatprep.subr.mxu0 0.0
        %679 = vmatpush1.msra.mxu0 0.0
        %680 = vmatprep.subr.mxu0 0.0
        %681 = vmatpush1.msra.mxu0 0.0
        %682 = vmatprep.subr.mxu0 0.0
        %683 = vmatpush1.msra.mxu0 0.0
        %684 = vmatprep.subr.mxu0 0.0
        %685 = vmatpush1.msra.mxu0 0.0
        %686 = vmatprep.subr.mxu0 0.0
        %687 = vmatpush1.msra.mxu0 0.0
        %688 = vmatprep.mubr.f32.mxu0 0.0
        %689 = vmatmul.mubr.f32.gmra.mrb[0].mxu0 %v622
        %v690 = vpop.f32.mrb[0].mxu0
        %v691 = vadd.f32 0.0, %v690
        %v692 = vpop.f32.mrb[0].mxu0
        %693 = vdwg.mxu0
        %v694 = vadd.f32 %v392, %v691
        %v695 = vtanh.pop %v694
        %v696 = vmul.f32 %v695, 0.5
        %v697 = vadd.f32 %v696, 0.5
        %v699 = vrot.slane %v605, 4
        %v701 = vmul.f32 %v697, %v699
        %703 = vrot.lane.b32.xlu0 %v695, 96
        %v704 = vpop.permute.xlu0 %703
        %v706 = vmul.f32 %v697, %v704
        %708 = vrot.lane.b32.xlu0 %v706, 16
        %v709 = vpop.permute.xlu0 %708
        %v711 = vadd.f32 %v701, %v709
        %v712 = vtanh.pop %v711
        %714 = vrot.lane.b32.xlu0 %v712, 32
        %v715 = vpop.permute.xlu0 %714
        %v717 = vmul.f32 %v697, %v715
        %719 = vrot.lane.b32.xlu0 %v717, 80
        %v720 = vpop.permute.xlu0 %719
        %s722 = scalar_lea.vmem %s271, 8 [#allocation7]
        %723 = vst.msk [vmem:[%s722] sm:$0xf] %vm511, %v720
        %v724 = vsel %vm307, %v720, 0
        %726 = vmatprep.subr.mxu0 0.0
        %727 = vmatpush1.msra.mxu0 %v405
        %728 = vmatprep.subr.mxu0 0.0
        %729 = vmatpush1.msra.mxu0 %v406
        %730 = vmatprep.subr.mxu0 0.0
        %731 = vmatpush1.msra.mxu0 0.0
        %732 = vmatprep.subr.mxu0 0.0
        %733 = vmatpush1.msra.mxu0 0.0
        %734 = vmatprep.subr.mxu0 0.0
        %735 = vmatpush1.msra.mxu0 0.0
        %736 = vmatprep.subr.mxu0 0.0
        %737 = vmatpush1.msra.mxu0 0.0
        %738 = vmatprep.subr.mxu0 0.0
        %739 = vmatpush1.msra.mxu0 0.0
        %740 = vmatprep.subr.mxu0 0.0
        %741 = vmatpush1.msra.mxu0 0.0
        %742 = vmatprep.subr.mxu0 0.0
        %743 = vmatpush1.msra.mxu0 0.0
        %744 = vmatprep.subr.mxu0 0.0
        %745 = vmatpush1.msra.mxu0 0.0
        %746 = vmatprep.subr.mxu0 0.0
        %747 = vmatpush1.msra.mxu0 0.0
        %748 = vmatprep.subr.mxu0 0.0
        %749 = vmatpush1.msra.mxu0 0.0
        %750 = vmatprep.subr.mxu0 0.0
        %751 = vmatpush1.msra.mxu0 0.0
        %752 = vmatprep.subr.mxu0 0.0
        %753 = vmatpush1.msra.mxu0 0.0
        %754 = vmatprep.subr.mxu0 0.0
        %755 = vmatpush1.msra.mxu0 0.0
        %756 = vmatprep.subr.mxu0 0.0
        %757 = vmatpush1.msra.mxu0 0.0
        %758 = vmatprep.subr.mxu0 0.0
        %759 = vmatpush1.msra.mxu0 0.0
        %760 = vmatprep.subr.mxu0 0.0
        %761 = vmatpush1.msra.mxu0 0.0
        %762 = vmatprep.subr.mxu0 0.0
        %763 = vmatpush1.msra.mxu0 0.0
        %764 = vmatprep.subr.mxu0 0.0
        %765 = vmatpush1.msra.mxu0 0.0
        %766 = vmatprep.subr.mxu0 0.0
        %767 = vmatpush1.msra.mxu0 0.0
        %768 = vmatprep.subr.mxu0 0.0
        %769 = vmatpush1.msra.mxu0 0.0
        %770 = vmatprep.subr.mxu0 0.0
        %771 = vmatpush1.msra.mxu0 0.0
        %772 = vmatprep.subr.mxu0 0.0
        %773 = vmatpush1.msra.mxu0 0.0
        %774 = vmatprep.subr.mxu0 0.0
        %775 = vmatpush1.msra.mxu0 0.0
        %776 = vmatprep.subr.mxu0 0.0
        %777 = vmatpush1.msra.mxu0 0.0
        %778 = vmatprep.subr.mxu0 0.0
        %779 = vmatpush1.msra.mxu0 0.0
        %780 = vmatprep.subr.mxu0 0.0
        %781 = vmatpush1.msra.mxu0 0.0
        %782 = vmatprep.subr.mxu0 0.0
        %783 = vmatpush1.msra.mxu0 0.0
        %784 = vmatprep.subr.mxu0 0.0
        %785 = vmatpush1.msra.mxu0 0.0
        %786 = vmatprep.subr.mxu0 0.0
        %787 = vmatpush1.msra.mxu0 0.0
        %788 = vmatprep.subr.mxu0 0.0
        %789 = vmatpush1.msra.mxu0 0.0
        %790 = vmatprep.mubr.f32.mxu0 0.0
        %791 = vmatmul.mubr.f32.gmra.mrb[0].mxu0 %v724
        %v792 = vpop.f32.mrb[0].mxu0
        %v793 = vadd.f32 0.0, %v792
        %v794 = vpop.f32.mrb[0].mxu0
        %795 = vdwg.mxu0
        %v797 = vrot.slane %v793, 4
        %v799 = vadd.f32 %v392, %v797
        %v800 = vtanh.pop %v799
        %v801 = vmul.f32 %v800, 0.5
        %v802 = vadd.f32 %v801, 0.5
        %v804 = vrot.slane %v711, 4
        %v806 = vmul.f32 %v802, %v804
        %808 = vrot.lane.b32.xlu0 %v800, 96
        %v809 = vpop.permute.xlu0 %808
        %v811 = vmul.f32 %v802, %v809
        %813 = vrot.lane.b32.xlu0 %v811, 16
        %v814 = vpop.permute.xlu0 %813
        %v816 = vadd.f32 %v806, %v814
        %v817 = vtanh.pop %v816
        %819 = vrot.lane.b32.xlu0 %v817, 32
        %v820 = vpop.permute.xlu0 %819
        %v822 = vmul.f32 %v802, %v820
        %824 = vrot.lane.b32.xlu0 %v822, 80
        %v825 = vpop.permute.xlu0 %824
        %s827 = scalar_lea.vmem %s271, 12 [#allocation7]
        %828 = vst.msk [vmem:[%s827 - $0x4] sm:$0xf0] %vm617, %v825
        %v829 = vrot.slane %v822, 4
        %830 = vrot.lane.b32.xlu0 %v829, 80
        %v831 = vpop.permute.xlu0 %830
        %v832 = vsel %vm307, %v831, 0
        %834 = vmatprep.subr.mxu0 0.0
        %835 = vmatpush1.msra.mxu0 %v405
        %836 = vmatprep.subr.mxu0 0.0
        %837 = vmatpush1.msra.mxu0 %v406
        %838 = vmatprep.subr.mxu0 0.0
        %839 = vmatpush1.msra.mxu0 0.0
        %840 = vmatprep.subr.mxu0 0.0
        %841 = vmatpush1.msra.mxu0 0.0
        %842 = vmatprep.subr.mxu0 0.0
        %843 = vmatpush1.msra.mxu0 0.0
        %844 = vmatprep.subr.mxu0 0.0
        %845 = vmatpush1.msra.mxu0 0.0
        %846 = vmatprep.subr.mxu0 0.0
        %847 = vmatpush1.msra.mxu0 0.0
        %848 = vmatprep.subr.mxu0 0.0
        %849 = vmatpush1.msra.mxu0 0.0
        %850 = vmatprep.subr.mxu0 0.0
        %851 = vmatpush1.msra.mxu0 0.0
        %852 = vmatprep.subr.mxu0 0.0
        %853 = vmatpush1.msra.mxu0 0.0
        %854 = vmatprep.subr.mxu0 0.0
        %855 = vmatpush1.msra.mxu0 0.0
        %856 = vmatprep.subr.mxu0 0.0
        %857 = vmatpush1.msra.mxu0 0.0
        %858 = vmatprep.subr.mxu0 0.0
        %859 = vmatpush1.msra.mxu0 0.0
        %860 = vmatprep.subr.mxu0 0.0
        %861 = vmatpush1.msra.mxu0 0.0
        %862 = vmatprep.subr.mxu0 0.0
        %863 = vmatpush1.msra.mxu0 0.0
        %864 = vmatprep.subr.mxu0 0.0
        %865 = vmatpush1.msra.mxu0 0.0
        %866 = vmatprep.subr.mxu0 0.0
        %867 = vmatpush1.msra.mxu0 0.0
        %868 = vmatprep.subr.mxu0 0.0
        %869 = vmatpush1.msra.mxu0 0.0
        %870 = vmatprep.subr.mxu0 0.0
        %871 = vmatpush1.msra.mxu0 0.0
        %872 = vmatprep.subr.mxu0 0.0
        %873 = vmatpush1.msra.mxu0 0.0
        %874 = vmatprep.subr.mxu0 0.0
        %875 = vmatpush1.msra.mxu0 0.0
        %876 = vmatprep.subr.mxu0 0.0
        %877 = vmatpush1.msra.mxu0 0.0
        %878 = vmatprep.subr.mxu0 0.0
        %879 = vmatpush1.msra.mxu0 0.0
        %880 = vmatprep.subr.mxu0 0.0
        %881 = vmatpush1.msra.mxu0 0.0
        %882 = vmatprep.subr.mxu0 0.0
        %883 = vmatpush1.msra.mxu0 0.0
        %884 = vmatprep.subr.mxu0 0.0
        %885 = vmatpush1.msra.mxu0 0.0
        %886 = vmatprep.subr.mxu0 0.0
        %887 = vmatpush1.msra.mxu0 0.0
        %888 = vmatprep.subr.mxu0 0.0
        %889 = vmatpush1.msra.mxu0 0.0
        %890 = vmatprep.subr.mxu0 0.0
        %891 = vmatpush1.msra.mxu0 0.0
        %892 = vmatprep.subr.mxu0 0.0
        %893 = vmatpush1.msra.mxu0 0.0
        %894 = vmatprep.subr.mxu0 0.0
        %895 = vmatpush1.msra.mxu0 0.0
        %896 = vmatprep.subr.mxu0 0.0
        %897 = vmatpush1.msra.mxu0 0.0
        %898 = vmatprep.mubr.f32.mxu0 0.0
        %899 = vmatmul.mubr.f32.gmra.mrb[0].mxu0 %v832
        %v900 = vpop.f32.mrb[0].mxu0
        %v901 = vadd.f32 0.0, %v900
        %v902 = vpop.f32.mrb[0].mxu0
        %903 = vdwg.mxu0
        %v904 = vadd.f32 %v397, %v901
        %v905 = vtanh.pop %v904
        %v906 = vmul.f32 %v905, 0.5
        %v907 = vadd.f32 %v906, 0.5
        %v909 = vrot.slane %v816, 4
        %v911 = vmul.f32 %v907, %v909
        %913 = vrot.lane.b32.xlu0 %v905, 96
        %v914 = vpop.permute.xlu0 %913
        %v916 = vmul.f32 %v907, %v914
        %918 = vrot.lane.b32.xlu0 %v916, 16
        %v919 = vpop.permute.xlu0 %918
        %v921 = vadd.f32 %v911, %v919
        %v922 = vtanh.pop %v921
        %924 = vrot.lane.b32.xlu0 %v922, 32
        %v925 = vpop.permute.xlu0 %924
        %v927 = vmul.f32 %v907, %v925
        %929 = vrot.lane.b32.xlu0 %v927, 80
        %v930 = vpop.permute.xlu0 %929
        %s932 = scalar_lea.vmem %s271, 16 [#allocation7]
        %933 = vst.msk [vmem:[%s932] sm:$0xf] %vm511, %v930
        %v934 = vsel %vm307, %v930, 0
        %936 = vmatprep.subr.mxu0 0.0
        %937 = vmatpush1.msra.mxu0 %v405
        %938 = vmatprep.subr.mxu0 0.0
        %939 = vmatpush1.msra.mxu0 %v406
        %940 = vmatprep.subr.mxu0 0.0
        %941 = vmatpush1.msra.mxu0 0.0
        %942 = vmatprep.subr.mxu0 0.0
        %943 = vmatpush1.msra.mxu0 0.0
        %944 = vmatprep.subr.mxu0 0.0
        %945 = vmatpush1.msra.mxu0 0.0
        %946 = vmatprep.subr.mxu0 0.0
        %947 = vmatpush1.msra.mxu0 0.0
        %948 = vmatprep.subr.mxu0 0.0
        %949 = vmatpush1.msra.mxu0 0.0
        %950 = vmatprep.subr.mxu0 0.0
        %951 = vmatpush1.msra.mxu0 0.0
        %952 = vmatprep.subr.mxu0 0.0
        %953 = vmatpush1.msra.mxu0 0.0
        %954 = vmatprep.subr.mxu0 0.0
        %955 = vmatpush1.msra.mxu0 0.0
        %956 = vmatprep.subr.mxu0 0.0
        %957 = vmatpush1.msra.mxu0 0.0
        %958 = vmatprep.subr.mxu0 0.0
        %959 = vmatpush1.msra.mxu0 0.0
        %960 = vmatprep.subr.mxu0 0.0
        %961 = vmatpush1.msra.mxu0 0.0
        %962 = vmatprep.subr.mxu0 0.0
        %963 = vmatpush1.msra.mxu0 0.0
        %964 = vmatprep.subr.mxu0 0.0
        %965 = vmatpush1.msra.mxu0 0.0
        %966 = vmatprep.subr.mxu0 0.0
        %967 = vmatpush1.msra.mxu0 0.0
        %968 = vmatprep.subr.mxu0 0.0
        %969 = vmatpush1.msra.mxu0 0.0
        %970 = vmatprep.subr.mxu0 0.0
        %971 = vmatpush1.msra.mxu0 0.0
        %972 = vmatprep.subr.mxu0 0.0
        %973 = vmatpush1.msra.mxu0 0.0
        %974 = vmatprep.subr.mxu0 0.0
        %975 = vmatpush1.msra.mxu0 0.0
        %976 = vmatprep.subr.mxu0 0.0
        %977 = vmatpush1.msra.mxu0 0.0
        %978 = vmatprep.subr.mxu0 0.0
        %979 = vmatpush1.msra.mxu0 0.0
        %980 = vmatprep.subr.mxu0 0.0
        %981 = vmatpush1.msra.mxu0 0.0
        %982 = vmatprep.subr.mxu0 0.0
        %983 = vmatpush1.msra.mxu0 0.0
        %984 = vmatprep.subr.mxu0 0.0
        %985 = vmatpush1.msra.mxu0 0.0
        %986 = vmatprep.subr.mxu0 0.0
        %987 = vmatpush1.msra.mxu0 0.0
        %988 = vmatprep.subr.mxu0 0.0
        %989 = vmatpush1.msra.mxu0 0.0
        %990 = vmatprep.subr.mxu0 0.0
        %991 = vmatpush1.msra.mxu0 0.0
        %992 = vmatprep.subr.mxu0 0.0
        %993 = vmatpush1.msra.mxu0 0.0
        %994 = vmatprep.subr.mxu0 0.0
        %995 = vmatpush1.msra.mxu0 0.0
        %996 = vmatprep.subr.mxu0 0.0
        %997 = vmatpush1.msra.mxu0 0.0
        %998 = vmatprep.subr.mxu0 0.0
        %999 = vmatpush1.msra.mxu0 0.0
        %1000 = vmatprep.mubr.f32.mxu0 0.0
        %1001 = vmatmul.mubr.f32.gmra.mrb[0].mxu0 %v934
        %v1002 = vpop.f32.mrb[0].mxu0
        %v1003 = vadd.f32 0.0, %v1002
        %v1004 = vpop.f32.mrb[0].mxu0
        %1005 = vdwg.mxu0
        %v1007 = vrot.slane %v1003, 4
        %v1009 = vadd.f32 %v397, %v1007
        %v1010 = vtanh.pop %v1009
        %v1011 = vmul.f32 %v1010, 0.5
        %v1012 = vadd.f32 %v1011, 0.5
        %v1014 = vrot.slane %v921, 4
        %v1016 = vmul.f32 %v1012, %v1014
        %1018 = vrot.lane.b32.xlu0 %v1010, 96
        %v1019 = vpop.permute.xlu0 %1018
        %v1021 = vmul.f32 %v1012, %v1019
        %1023 = vrot.lane.b32.xlu0 %v1021, 16
        %v1024 = vpop.permute.xlu0 %1023
        %v1026 = vadd.f32 %v1016, %v1024
        %v1027 = vtanh.pop %v1026
        %1029 = vrot.lane.b32.xlu0 %v1027, 32
        %v1030 = vpop.permute.xlu0 %1029
        %v1032 = vmul.f32 %v1012, %v1030
        %1034 = vrot.lane.b32.xlu0 %v1032, 80
        %v1035 = vpop.permute.xlu0 %1034
        %s1037 = scalar_lea.vmem %s271, 20 [#allocation7]
        %1038 = vst.msk [vmem:[%s1037 - $0x4] sm:$0xf0] %vm617, %v1035
        %v1039 = vrot.slane %v1032, 4
        %1040 = vrot.lane.b32.xlu0 %v1039, 80
        %v1041 = vpop.permute.xlu0 %1040
        %v1042 = vsel %vm307, %v1041, 0
        %1044 = vmatprep.subr.mxu0 0.0
        %1045 = vmatpush1.msra.mxu0 %v405
        %1046 = vmatprep.subr.mxu0 0.0
        %1047 = vmatpush1.msra.mxu0 %v406
        %1048 = vmatprep.subr.mxu0 0.0
        %1049 = vmatpush1.msra.mxu0 0.0
        %1050 = vmatprep.subr.mxu0 0.0
        %1051 = vmatpush1.msra.mxu0 0.0
        %1052 = vmatprep.subr.mxu0 0.0
        %1053 = vmatpush1.msra.mxu0 0.0
        %1054 = vmatprep.subr.mxu0 0.0
        %1055 = vmatpush1.msra.mxu0 0.0
        %1056 = vmatprep.subr.mxu0 0.0
        %1057 = vmatpush1.msra.mxu0 0.0
        %1058 = vmatprep.subr.mxu0 0.0
        %1059 = vmatpush1.msra.mxu0 0.0
        %1060 = vmatprep.subr.mxu0 0.0
        %1061 = vmatpush1.msra.mxu0 0.0
        %1062 = vmatprep.subr.mxu0 0.0
        %1063 = vmatpush1.msra.mxu0 0.0
        %1064 = vmatprep.subr.mxu0 0.0
        %1065 = vmatpush1.msra.mxu0 0.0
        %1066 = vmatprep.subr.mxu0 0.0
        %1067 = vmatpush1.msra.mxu0 0.0
        %1068 = vmatprep.subr.mxu0 0.0
        %1069 = vmatpush1.msra.mxu0 0.0
        %1070 = vmatprep.subr.mxu0 0.0
        %1071 = vmatpush1.msra.mxu0 0.0
        %1072 = vmatprep.subr.mxu0 0.0
        %1073 = vmatpush1.msra.mxu0 0.0
        %1074 = vmatprep.subr.mxu0 0.0
        %1075 = vmatpush1.msra.mxu0 0.0
        %1076 = vmatprep.subr.mxu0 0.0
        %1077 = vmatpush1.msra.mxu0 0.0
        %1078 = vmatprep.subr.mxu0 0.0
        %1079 = vmatpush1.msra.mxu0 0.0
        %1080 = vmatprep.subr.mxu0 0.0
        %1081 = vmatpush1.msra.mxu0 0.0
        %1082 = vmatprep.subr.mxu0 0.0
        %1083 = vmatpush1.msra.mxu0 0.0
        %1084 = vmatprep.subr.mxu0 0.0
        %1085 = vmatpush1.msra.mxu0 0.0
        %1086 = vmatprep.subr.mxu0 0.0
        %1087 = vmatpush1.msra.mxu0 0.0
        %1088 = vmatprep.subr.mxu0 0.0
        %1089 = vmatpush1.msra.mxu0 0.0
        %1090 = vmatprep.subr.mxu0 0.0
        %1091 = vmatpush1.msra.mxu0 0.0
        %1092 = vmatprep.subr.mxu0 0.0
        %1093 = vmatpush1.msra.mxu0 0.0
        %1094 = vmatprep.subr.mxu0 0.0
        %1095 = vmatpush1.msra.mxu0 0.0
        %1096 = vmatprep.subr.mxu0 0.0
        %1097 = vmatpush1.msra.mxu0 0.0
        %1098 = vmatprep.subr.mxu0 0.0
        %1099 = vmatpush1.msra.mxu0 0.0
        %1100 = vmatprep.subr.mxu0 0.0
        %1101 = vmatpush1.msra.mxu0 0.0
        %1102 = vmatprep.subr.mxu0 0.0
        %1103 = vmatpush1.msra.mxu0 0.0
        %1104 = vmatprep.subr.mxu0 0.0
        %1105 = vmatpush1.msra.mxu0 0.0
        %1106 = vmatprep.subr.mxu0 0.0
        %1107 = vmatpush1.msra.mxu0 0.0
        %1108 = vmatprep.mubr.f32.mxu0 0.0
        %1109 = vmatmul.mubr.f32.gmra.mrb[0].mxu0 %v1042
        %v1110 = vpop.f32.mrb[0].mxu0
        %v1111 = vadd.f32 0.0, %v1110
        %v1112 = vpop.f32.mrb[0].mxu0
        %1113 = vdwg.mxu0
        %v1114 = vadd.f32 %v402, %v1111
        %v1115 = vtanh.pop %v1114
        %v1116 = vmul.f32 %v1115, 0.5
        %v1117 = vadd.f32 %v1116, 0.5
        %v1119 = vrot.slane %v1026, 4
        %v1121 = vmul.f32 %v1117, %v1119
        %1123 = vrot.lane.b32.xlu0 %v1115, 96
        %v1124 = vpop.permute.xlu0 %1123
        %v1126 = vmul.f32 %v1117, %v1124
        %1128 = vrot.lane.b32.xlu0 %v1126, 16
        %v1129 = vpop.permute.xlu0 %1128
        %v1131 = vadd.f32 %v1121, %v1129
        %v1132 = vtanh.pop %v1131
        %1134 = vrot.lane.b32.xlu0 %v1132, 32
        %v1135 = vpop.permute.xlu0 %1134
        %v1137 = vmul.f32 %v1117, %v1135
        %1139 = vrot.lane.b32.xlu0 %v1137, 80
        %v1140 = vpop.permute.xlu0 %1139
        %s1142 = scalar_lea.vmem %s271, 24 [#allocation7]
        %1143 = vst.msk [vmem:[%s1142] sm:$0xf] %vm511, %v1140
        %v1144 = vsel %vm307, %v1140, 0
        %1146 = vmatprep.subr.mxu0 0.0
        %1147 = vmatpush1.msra.mxu0 %v405
        %1148 = vmatprep.subr.mxu0 0.0
        %1149 = vmatpush1.msra.mxu0 %v406
        %1150 = vmatprep.subr.mxu0 0.0
        %1151 = vmatpush1.msra.mxu0 0.0
        %1152 = vmatprep.subr.mxu0 0.0
        %1153 = vmatpush1.msra.mxu0 0.0
        %1154 = vmatprep.subr.mxu0 0.0
        %1155 = vmatpush1.msra.mxu0 0.0
        %1156 = vmatprep.subr.mxu0 0.0
        %1157 = vmatpush1.msra.mxu0 0.0
        %1158 = vmatprep.subr.mxu0 0.0
        %1159 = vmatpush1.msra.mxu0 0.0
        %1160 = vmatprep.subr.mxu0 0.0
        %1161 = vmatpush1.msra.mxu0 0.0
        %1162 = vmatprep.subr.mxu0 0.0
        %1163 = vmatpush1.msra.mxu0 0.0
        %1164 = vmatprep.subr.mxu0 0.0
        %1165 = vmatpush1.msra.mxu0 0.0
        %1166 = vmatprep.subr.mxu0 0.0
        %1167 = vmatpush1.msra.mxu0 0.0
        %1168 = vmatprep.subr.mxu0 0.0
        %1169 = vmatpush1.msra.mxu0 0.0
        %1170 = vmatprep.subr.mxu0 0.0
        %1171 = vmatpush1.msra.mxu0 0.0
        %1172 = vmatprep.subr.mxu0 0.0
        %1173 = vmatpush1.msra.mxu0 0.0
        %1174 = vmatprep.subr.mxu0 0.0
        %1175 = vmatpush1.msra.mxu0 0.0
        %1176 = vmatprep.subr.mxu0 0.0
        %1177 = vmatpush1.msra.mxu0 0.0
        %1178 = vmatprep.subr.mxu0 0.0
        %1179 = vmatpush1.msra.mxu0 0.0
        %1180 = vmatprep.subr.mxu0 0.0
        %1181 = vmatpush1.msra.mxu0 0.0
        %1182 = vmatprep.subr.mxu0 0.0
        %1183 = vmatpush1.msra.mxu0 0.0
        %1184 = vmatprep.subr.mxu0 0.0
        %1185 = vmatpush1.msra.mxu0 0.0
        %1186 = vmatprep.subr.mxu0 0.0
        %1187 = vmatpush1.msra.mxu0 0.0
        %1188 = vmatprep.subr.mxu0 0.0
        %1189 = vmatpush1.msra.mxu0 0.0
        %1190 = vmatprep.subr.mxu0 0.0
        %1191 = vmatpush1.msra.mxu0 0.0
        %1192 = vmatprep.subr.mxu0 0.0
        %1193 = vmatpush1.msra.mxu0 0.0
        %1194 = vmatprep.subr.mxu0 0.0
        %1195 = vmatpush1.msra.mxu0 0.0
        %1196 = vmatprep.subr.mxu0 0.0
        %1197 = vmatpush1.msra.mxu0 0.0
        %1198 = vmatprep.subr.mxu0 0.0
        %1199 = vmatpush1.msra.mxu0 0.0
        %1200 = vmatprep.subr.mxu0 0.0
        %1201 = vmatpush1.msra.mxu0 0.0
        %1202 = vmatprep.subr.mxu0 0.0
        %1203 = vmatpush1.msra.mxu0 0.0
        %1204 = vmatprep.subr.mxu0 0.0
        %1205 = vmatpush1.msra.mxu0 0.0
        %1206 = vmatprep.subr.mxu0 0.0
        %1207 = vmatpush1.msra.mxu0 0.0
        %1208 = vmatprep.subr.mxu0 0.0
        %1209 = vmatpush1.msra.mxu0 0.0
        %1210 = vmatprep.mubr.f32.mxu0 0.0
        %1211 = vmatmul.mubr.f32.gmra.mrb[0].mxu0 %v1144
        %v1212 = vpop.f32.mrb[0].mxu0
        %v1213 = vadd.f32 0.0, %v1212
        %v1214 = vpop.f32.mrb[0].mxu0
        %1215 = vdwg.mxu0
        %v1217 = vrot.slane %v1213, 4
        %v1219 = vadd.f32 %v402, %v1217
        %v1220 = vtanh.pop %v1219
        %v1221 = vmul.f32 %v1220, 0.5
        %v1222 = vadd.f32 %v1221, 0.5
        %v1224 = vrot.slane %v1131, 4
        %v1226 = vmul.f32 %v1222, %v1224
        %1228 = vrot.lane.b32.xlu0 %v1220, 96
        %v1229 = vpop.permute.xlu0 %1228
        %v1231 = vmul.f32 %v1222, %v1229
        %1233 = vrot.lane.b32.xlu0 %v1231, 16
        %v1234 = vpop.permute.xlu0 %1233
        %v1236 = vadd.f32 %v1226, %v1234
        %v1237 = vtanh.pop %v1236
        %1239 = vrot.lane.b32.xlu0 %v1237, 32
        %v1240 = vpop.permute.xlu0 %1239
        %v1242 = vmul.f32 %v1222, %v1240
        %1244 = vrot.lane.b32.xlu0 %v1242, 80
        %v1245 = vpop.permute.xlu0 %1244
        %s1247 = scalar_lea.vmem %s271, 28 [#allocation7]
        %1248 = vst.msk [vmem:[%s1247 - $0x4] sm:$0xf0] %vm617, %v1245
        %1249 = vst.msk [vmem:[#allocation2 - $0x4] sm:$0xf0] %vm617, %v1245
        %1251 = vrot.lane.b32.xlu0 %v1236, 112
        %v1252 = vpop.permute.xlu0 %1251
        %1254 = vst.msk [vmem:[#allocation3 - $0x4] sm:$0xf0] %vm617, %v1252
        %s1255 = sand.u32 %s147, 1
        %s1256 = scalar_lea.sflag [#allocation6], %s1255
        %s1257 = sand.u32 %s147, 1
        %s1258 = smul.addr %s1257, 32
        %s1259 = scalar_lea.vmem [#allocation7], %s1258
        // Predicated region
        $region45: #{tpu_custom_call.1} parent=35 // pred_check
          %p1260 = pneg %p157
        $region46: #{tpu_custom_call.1} parent=35 // pred_check_branch
          %1262 = sbr.rel (%p1260) target = $region48
        $region47: #{tpu_custom_call.1} parent=35 // pred_region
          %s1263 = smul.u32 8, %s26
          %s1265 = ssub.s32 512, 512
          %1266 = vsyncadd %s1256, %s1265
          %s1267 = smul.addr %s25, 8
          %s1268 = sadd.s32 %s1263, %s1267
          %s1269 = smul.addr %s1268, 64
          %s1270 = scalar_lea.hbm %s4, %s1269
          %s1271 = sshll.u32 %s1259, 4
          %s1272 = int_to_ptr.vmem [resolvable:$true] %s1271
          %1277 = dma.vmem_to_hbm [thread:$0]  %s1272, 512, %s1270, %s1256, 64, 64, 4
        $region48: #{tpu_custom_call.1} parent=35 // pred_fallthru
          _
      $region36: #{tpu_custom_call.1} parent=5 // pred_fallthru
        _
      %p1278 = scmp.le.s32.totalorder 2, %s16
      // Predicated region
      $region49: #{tpu_custom_call.1} parent=5 // pred_check
        %p1279 = pneg %p1278
      $region50: #{tpu_custom_call.1} parent=5 // pred_check_branch
        %1281 = sbr.rel (%p1279) target = $region52
      $region51: #{tpu_custom_call.1} parent=5 // pred_region
        %s1282 = ssub.s32 %s16, 2
        // Predicated region
        $region53: #{tpu_custom_call.1} parent=51 // pred_check
          %p1283 = pneg %p163
        $region54: #{tpu_custom_call.1} parent=51 // pred_check_branch
          %1285 = sbr.rel (%p1283) target = $region56
        $region55: #{tpu_custom_call.1} parent=51 // pred_region
          %s1286 = sand.u32 %s148, 1
          %s1287 = scalar_lea.sflag [#allocation6], %s1286
          %s1288 = sand.u32 %s148, 1
          %s1289 = smul.addr %s1288, 32
          %s1290 = scalar_lea.vmem [#allocation7], %s1289
          %1291 = dma.done %s1287, 512
        $region56: #{tpu_custom_call.1} parent=51 // pred_fallthru
          _
      $region52: #{tpu_custom_call.1} parent=5 // pred_fallthru
        _
    $region6: #{tpu_custom_call.1} parent=1 // loop_footer
      %s20 = sadd.s32 1, %s16
    $region7: #{tpu_custom_call.1} parent=1 // loop_footer_branch
      %15 = sbr.rel target = $region3
    $region8: #{tpu_custom_call.1} parent=1 // loop_exit
      _
    %1292 = vsyncpa [#allocation5], 1
    %s1293 = scalar_lea.sflag [#allocation5], 1
    %1294 = vsyncpa %s1293, 1
    %1295 = vsyncpa [#allocation6], 1
    %s1296 = scalar_lea.sflag [#allocation6], 1
    %1297 = vsyncpa %s1296, 1

</llo_original>
